<compile_context>
chip_gen: v7x
topology: tpu7x:2x2x1
jax: 0.10.0
libtpu: 0.0.40
codegen_flags: <defaults>
</compile_context>

<pallas_src>
import jax
import jax.numpy as jnp
from jax import lax
from jax.experimental import pallas as pl
from jax.experimental.pallas import tpu as pltpu

# ---- static configuration ---------------------------------------------------
N, H, W = 2, 16, 16
C_IN, C_OUT = 16, 32
K = 3
M = N * H * W                   # 512 -> lane axis inside the kernel
BN_EPS = 1e-5


# ---- Pallas kernel ----------------------------------------------------------
def _refinement_block_kernel(x_ref, w0_ref, wt_ref, b_ref, mask_ref, o_ref):
    f32 = jnp.float32
    bf16 = jnp.bfloat16

    # ---- initial: 1x1 conv + bias + ReLU (K=16, kept f32; feeds residual) ---
    init = jnp.dot(w0_ref[...], x_ref[...], preferred_element_type=f32)
    init = jnp.maximum(init + b_ref[0], 0.0)                    # (C_OUT, M) f32

    # ---- dilated 3x3 conv as ONE stacked-contraction MXU matmul -------------
    # Each tap is a lane-rotation of t; the precomputed border mask zeroes
    # every lane whose neighbour falls outside its own image.  Lanes that wrap
    # around in the roll are exactly such out-of-image lanes, so roll is
    # equivalent to a zero-padded shift here (also covers cross-image taps).
    def conv3x3(t, conv_idx, dil):
        taps = []
        for ky in range(K):
            for kx in range(K):
                off = ((ky - 1) * W + (kx - 1)) * dil
                rolled = pltpu.roll(t, shift=(-off) % M, axis=1) if off else t
                tap = ky * K + kx
                m = mask_ref[conv_idx, tap:tap + 1, :]          # (1, M) f32
                taps.append((rolled * m).astype(bf16))          # f32 VPU, bf16 MXU op
        stacked = jnp.concatenate(taps, axis=0)                 # (9*C_OUT, M) bf16
        return jnp.dot(wt_ref[conv_idx], stacked,               # (C_OUT, 9*C_OUT) x (9*C_OUT, M)
                       preferred_element_type=f32)

    t1 = jnp.maximum(conv3x3(init, 0, 1) + b_ref[1], 0.0)       # (C_OUT, M) f32
    t2 = jnp.maximum(conv3x3(t1, 1, 2) + b_ref[2], 0.0)         # (C_OUT, M) f32

    o_ref[...] = (init + t2).astype(o_ref.dtype)


# ---- one-time parameter packing (outside the per-call hot path) -------------
def prepare_params(p):
    """Fold BN into trunk weights, pack taps lane-dense along the contraction
    dim, cast trunk MXU weights to bf16, precompute per-tap border masks."""
    def fold(w, b, bn):
        gamma, beta, mean, var = bn
        s = gamma / jnp.sqrt(var + BN_EPS)
        return w * s[:, None, None, None], (b - mean) * s + beta

    def pack_taps(w):  # OIHW (O, I, 3, 3) -> (O, 9*I), col = (ky*3+kx)*I + i
        return jnp.transpose(w, (0, 2, 3, 1)).reshape(C_OUT, K * K * C_OUT)

    w1f, b1f = fold(p['w1'], p['b1'], p['bn1'])
    w2f, b2f = fold(p['w2'], p['b2'], p['bn2'])
    wt = jnp.stack([pack_taps(w1f), pack_taps(w2f)], 0).astype(jnp.bfloat16)   # (2, 32, 288)
    b = jnp.stack([p['b0'], b1f, b2f], 0)[:, :, None].astype(jnp.float32)      # (3, 32, 1)

    # border masks: 1.0 where the tap's neighbour lies inside the same image
    lane = jnp.arange(M, dtype=jnp.int32)
    xpos, ypos = lane % W, (lane // W) % H
    rows = []
    for dil in (1, 2):
        for ky in range(K):
            dy = (ky - 1) * dil
            for kx in range(K):
                dx = (kx - 1) * dil
                m = jnp.ones((M,), jnp.bool_)
                if dx > 0:
                    m = m & (xpos < W - dx)
                if dx < 0:
                    m = m & (xpos >= -dx)
                if dy > 0:
                    m = m & (ypos < H - dy)
                if dy < 0:
                    m = m & (ypos >= -dy)
                rows.append(m)
    mask = jnp.stack(rows, 0).reshape(2, K * K, M).astype(jnp.float32)         # (2, 9, 512)

    return dict(w0=p['w0'].astype(jnp.float32), wt=wt, b=b, mask=mask)


# ---- hot path: single pallas_call on the (C, N*H*W) lane-dense layout -------
@jax.jit
def refinement_stage_block_cm(x_cm, packed):
    vmem = pl.BlockSpec(memory_space=pltpu.MemorySpace.VMEM)
    return pl.pallas_call(
        _refinement_block_kernel,
        out_shape=jax.ShapeDtypeStruct((C_OUT, M), jnp.float32),
        in_specs=[vmem, vmem, vmem, vmem, vmem],
        out_specs=vmem,
    )(x_cm, packed['w0'], packed['wt'], packed['b'], packed['mask'])


def refinement_stage_block_nchw(x_nchw, packed):
    # Layout adapters for the NCHW test harness only; in a real model the
    # (C, N*H*W) layout would be carried across adjacent ops instead.
    x_cm = jnp.transpose(x_nchw, (1, 0, 2, 3)).reshape(C_IN, M)
    y_cm = refinement_stage_block_cm(x_cm, packed)
    return jnp.transpose(y_cm.reshape(C_OUT, N, H, W), (1, 0, 2, 3))


# ---- deterministic parameter construction -----------------------------------
def make_params(key):
    ks = jax.random.split(key, 8)

    def bn_stats(k, c):
        k1, k2, k3, k4 = jax.random.split(k, 4)
        gamma = 1.0 + 0.1 * jax.random.normal(k1, (c,), jnp.float32)
        beta = 0.1 * jax.random.normal(k2, (c,), jnp.float32)
        mean = 0.1 * jax.random.normal(k3, (c,), jnp.float32)
        var = jnp.abs(jax.random.normal(k4, (c,), jnp.float32)) + 0.5
        return gamma, beta, mean, var

    return dict(
        w0=0.2 * jax.random.normal(ks[0], (C_OUT, C_IN), jnp.float32),
        b0=0.1 * jax.random.normal(ks[1], (C_OUT,), jnp.float32),
        w1=0.05 * jax.random.normal(ks[2], (C_OUT, C_OUT, K, K), jnp.float32),
        b1=0.1 * jax.random.normal(ks[3], (C_OUT,), jnp.float32),
        w2=0.05 * jax.random.normal(ks[4], (C_OUT, C_OUT, K, K), jnp.float32),
        b2=0.1 * jax.random.normal(ks[5], (C_OUT,), jnp.float32),
        bn1=bn_stats(ks[6], C_OUT),
        bn2=bn_stats(ks[7], C_OUT),
    )


# ---- pure-JAX reference (unfolded params, explicit BN) -----------------------
def reference_nchw(x_nchw, p):
    x = jnp.transpose(x_nchw, (0, 2, 3, 1))                       # NHWC
    init = jax.nn.relu(jnp.einsum('nhwc,oc->nhwo', x, p['w0']) + p['b0'])

    def conv_bn_relu(t, w, b, bn, dil):
        wh = jnp.transpose(w, (2, 3, 1, 0))                       # OIHW -> HWIO
        y = lax.conv_general_dilated(
            t, wh, window_strides=(1, 1), padding=[(dil, dil), (dil, dil)],
            rhs_dilation=(dil, dil),
            dimension_numbers=('NHWC', 'HWIO', 'NHWC')) + b
        gamma, beta, mean, var = bn
        y = gamma * (y - mean) / jnp.sqrt(var + BN_EPS) + beta
        return jax.nn.relu(y)

    t1 = conv_bn_relu(init, p['w1'], p['b1'], p['bn1'], 1)
    t2 = conv_bn_relu(t1, p['w2'], p['b2'], p['bn2'], 2)
    return jnp.transpose(init + t2, (0, 3, 1, 2))                 # back to NCHW


if __name__ == "__main__":
    key = jax.random.PRNGKey(0)
    kx, kp = jax.random.split(key)
    x = jax.random.normal(kx, (N, C_IN, H, W), jnp.float32)       # PyTorch NCHW input
    params = make_params(kp)

    packed = jax.block_until_ready(prepare_params(params))        # one-time packing

    y = refinement_stage_block_nchw(x, packed)
    jax.block_until_ready(y)

    y_ref = reference_nchw(x, params)
    assert y.shape == (N, C_OUT, H, W)
    err = float(jnp.max(jnp.abs(y - y_ref)))
    # trunk MXU operands are bf16 (f32 accumulate); tolerance covers that plus
    # the TPU default-precision reference convs.
    assert jnp.allclose(y, y_ref, atol=2e-2, rtol=2e-2), err
    print("KERNEL_OK")
</pallas_src>

<mosaic_0001>
module attributes {stable_mosaic.version = 11 : i64} {
  func.func @_refinement_block_kernel(%arg0: memref<16x512xf32, #tpu.memory_space<vmem>>, %arg1: memref<32x16xf32, #tpu.memory_space<vmem>>, %arg2: memref<2x32x288xbf16, #tpu.memory_space<vmem>>, %arg3: memref<3x32x1xf32, #tpu.memory_space<vmem>>, %arg4: memref<2x9x512xf32, #tpu.memory_space<vmem>>, %arg5: memref<32x512xf32, #tpu.memory_space<vmem>>) attributes {dimension_semantics = [], scalar_prefetch = 0 : i64, scratch_operands = 0 : i64, tpu.core_type = #tpu.core_type<tc>} {
    %c0 = arith.constant 0 : index
    %c0_0 = arith.constant 0 : index
    %0 = vector.load %arg1[%c0, %c0_0] : memref<32x16xf32, #tpu.memory_space<vmem>>, vector<32x16xf32>
    %c0_1 = arith.constant 0 : index
    %c0_2 = arith.constant 0 : index
    %1 = vector.load %arg0[%c0_1, %c0_2] : memref<16x512xf32, #tpu.memory_space<vmem>>, vector<16x512xf32>
    %cst = arith.constant dense<0.000000e+00> : vector<32x512xf32>
    %2 = tpu.matmul %0, %1, %cst {dimension_numbers = #tpu.dot_dimension_numbers<[1], [0], [0], [1], [0, 0, 1, 1], [], []>} : vector<32x16xf32>, vector<16x512xf32>, vector<32x512xf32> -> vector<32x512xf32>
    %c0_3 = arith.constant 0 : index
    %c0_4 = arith.constant 0 : index
    %c0_5 = arith.constant 0 : index
    %3 = vector.load %arg3[%c0_3, %c0_4, %c0_5] : memref<3x32x1xf32, #tpu.memory_space<vmem>>, vector<1x32x1xf32>
    %4 = vector.shape_cast %3 : vector<1x32x1xf32> to vector<32x1xf32>
    %5 = vector.broadcast %4 : vector<32x1xf32> to vector<32x512xf32>
    %6 = arith.addf %2, %5 : vector<32x512xf32>
    %cst_6 = arith.constant 0.000000e+00 : f32
    %7 = vector.broadcast %cst_6 : f32 to vector<32x512xf32>
    %8 = arith.maximumf %6, %7 : vector<32x512xf32>
    %c17_i32 = arith.constant 17 : i32
    %9 = tpu.dynamic_rotate %8 by %c17_i32 dim 1 : vector<32x512xf32>, i32 -> vector<32x512xf32>
    %c0_7 = arith.constant 0 : index
    %c0_8 = arith.constant 0 : index
    %c0_9 = arith.constant 0 : index
    %10 = vector.load %arg4[%c0_7, %c0_8, %c0_9] : memref<2x9x512xf32, #tpu.memory_space<vmem>>, vector<1x1x512xf32>
    %11 = vector.shape_cast %10 : vector<1x1x512xf32> to vector<1x512xf32>
    %12 = vector.broadcast %11 : vector<1x512xf32> to vector<32x512xf32>
    %13 = arith.mulf %9, %12 : vector<32x512xf32>
    %14 = arith.truncf %13 : vector<32x512xf32> to vector<32x512xbf16>
    %c16_i32 = arith.constant 16 : i32
    %15 = tpu.dynamic_rotate %8 by %c16_i32 dim 1 : vector<32x512xf32>, i32 -> vector<32x512xf32>
    %c0_10 = arith.constant 0 : index
    %c1 = arith.constant 1 : index
    %c0_11 = arith.constant 0 : index
    %16 = vector.load %arg4[%c0_10, %c1, %c0_11] : memref<2x9x512xf32, #tpu.memory_space<vmem>>, vector<1x1x512xf32>
    %17 = vector.shape_cast %16 : vector<1x1x512xf32> to vector<1x512xf32>
    %18 = vector.broadcast %17 : vector<1x512xf32> to vector<32x512xf32>
    %19 = arith.mulf %15, %18 : vector<32x512xf32>
    %20 = arith.truncf %19 : vector<32x512xf32> to vector<32x512xbf16>
    %c15_i32 = arith.constant 15 : i32
    %21 = tpu.dynamic_rotate %8 by %c15_i32 dim 1 : vector<32x512xf32>, i32 -> vector<32x512xf32>
    %c0_12 = arith.constant 0 : index
    %c2 = arith.constant 2 : index
    %c0_13 = arith.constant 0 : index
    %22 = vector.load %arg4[%c0_12, %c2, %c0_13] : memref<2x9x512xf32, #tpu.memory_space<vmem>>, vector<1x1x512xf32>
    %23 = vector.shape_cast %22 : vector<1x1x512xf32> to vector<1x512xf32>
    %24 = vector.broadcast %23 : vector<1x512xf32> to vector<32x512xf32>
    %25 = arith.mulf %21, %24 : vector<32x512xf32>
    %26 = arith.truncf %25 : vector<32x512xf32> to vector<32x512xbf16>
    %c1_i32 = arith.constant 1 : i32
    %27 = tpu.dynamic_rotate %8 by %c1_i32 dim 1 : vector<32x512xf32>, i32 -> vector<32x512xf32>
    %c0_14 = arith.constant 0 : index
    %c3 = arith.constant 3 : index
    %c0_15 = arith.constant 0 : index
    %28 = vector.load %arg4[%c0_14, %c3, %c0_15] : memref<2x9x512xf32, #tpu.memory_space<vmem>>, vector<1x1x512xf32>
    %29 = vector.shape_cast %28 : vector<1x1x512xf32> to vector<1x512xf32>
    %30 = vector.broadcast %29 : vector<1x512xf32> to vector<32x512xf32>
    %31 = arith.mulf %27, %30 : vector<32x512xf32>
    %32 = arith.truncf %31 : vector<32x512xf32> to vector<32x512xbf16>
    %c0_16 = arith.constant 0 : index
    %c4 = arith.constant 4 : index
    %c0_17 = arith.constant 0 : index
    %33 = vector.load %arg4[%c0_16, %c4, %c0_17] : memref<2x9x512xf32, #tpu.memory_space<vmem>>, vector<1x1x512xf32>
    %34 = vector.shape_cast %33 : vector<1x1x512xf32> to vector<1x512xf32>
    %35 = vector.broadcast %34 : vector<1x512xf32> to vector<32x512xf32>
    %36 = arith.mulf %8, %35 : vector<32x512xf32>
    %37 = arith.truncf %36 : vector<32x512xf32> to vector<32x512xbf16>
    %c511_i32 = arith.constant 511 : i32
    %38 = tpu.dynamic_rotate %8 by %c511_i32 dim 1 : vector<32x512xf32>, i32 -> vector<32x512xf32>
    %c0_18 = arith.constant 0 : index
    %c5 = arith.constant 5 : index
    %c0_19 = arith.constant 0 : index
    %39 = vector.load %arg4[%c0_18, %c5, %c0_19] : memref<2x9x512xf32, #tpu.memory_space<vmem>>, vector<1x1x512xf32>
    %40 = vector.shape_cast %39 : vector<1x1x512xf32> to vector<1x512xf32>
    %41 = vector.broadcast %40 : vector<1x512xf32> to vector<32x512xf32>
    %42 = arith.mulf %38, %41 : vector<32x512xf32>
    %43 = arith.truncf %42 : vector<32x512xf32> to vector<32x512xbf16>
    %c497_i32 = arith.constant 497 : i32
    %44 = tpu.dynamic_rotate %8 by %c497_i32 dim 1 : vector<32x512xf32>, i32 -> vector<32x512xf32>
    %c0_20 = arith.constant 0 : index
    %c6 = arith.constant 6 : index
    %c0_21 = arith.constant 0 : index
    %45 = vector.load %arg4[%c0_20, %c6, %c0_21] : memref<2x9x512xf32, #tpu.memory_space<vmem>>, vector<1x1x512xf32>
    %46 = vector.shape_cast %45 : vector<1x1x512xf32> to vector<1x512xf32>
    %47 = vector.broadcast %46 : vector<1x512xf32> to vector<32x512xf32>
    %48 = arith.mulf %44, %47 : vector<32x512xf32>
    %49 = arith.truncf %48 : vector<32x512xf32> to vector<32x512xbf16>
    %c496_i32 = arith.constant 496 : i32
    %50 = tpu.dynamic_rotate %8 by %c496_i32 dim 1 : vector<32x512xf32>, i32 -> vector<32x512xf32>
    %c0_22 = arith.constant 0 : index
    %c7 = arith.constant 7 : index
    %c0_23 = arith.constant 0 : index
    %51 = vector.load %arg4[%c0_22, %c7, %c0_23] : memref<2x9x512xf32, #tpu.memory_space<vmem>>, vector<1x1x512xf32>
    %52 = vector.shape_cast %51 : vector<1x1x512xf32> to vector<1x512xf32>
    %53 = vector.broadcast %52 : vector<1x512xf32> to vector<32x512xf32>
    %54 = arith.mulf %50, %53 : vector<32x512xf32>
    %55 = arith.truncf %54 : vector<32x512xf32> to vector<32x512xbf16>
    %c495_i32 = arith.constant 495 : i32
    %56 = tpu.dynamic_rotate %8 by %c495_i32 dim 1 : vector<32x512xf32>, i32 -> vector<32x512xf32>
    %c0_24 = arith.constant 0 : index
    %c8 = arith.constant 8 : index
    %c0_25 = arith.constant 0 : index
    %57 = vector.load %arg4[%c0_24, %c8, %c0_25] : memref<2x9x512xf32, #tpu.memory_space<vmem>>, vector<1x1x512xf32>
    %58 = vector.shape_cast %57 : vector<1x1x512xf32> to vector<1x512xf32>
    %59 = vector.broadcast %58 : vector<1x512xf32> to vector<32x512xf32>
    %60 = arith.mulf %56, %59 : vector<32x512xf32>
    %61 = arith.truncf %60 : vector<32x512xf32> to vector<32x512xbf16>
    %62 = tpu.concatenate %14, %20, %26, %32, %37, %43, %49, %55, %61 in 0 : vector<32x512xbf16>, vector<32x512xbf16>, vector<32x512xbf16>, vector<32x512xbf16>, vector<32x512xbf16>, vector<32x512xbf16>, vector<32x512xbf16>, vector<32x512xbf16>, vector<32x512xbf16> -> vector<288x512xbf16>
    %c0_26 = arith.constant 0 : index
    %c0_27 = arith.constant 0 : index
    %c0_28 = arith.constant 0 : index
    %63 = vector.load %arg2[%c0_26, %c0_27, %c0_28] : memref<2x32x288xbf16, #tpu.memory_space<vmem>>, vector<1x32x288xbf16>
    %64 = vector.shape_cast %63 : vector<1x32x288xbf16> to vector<32x288xbf16>
    %cst_29 = arith.constant dense<0.000000e+00> : vector<32x512xf32>
    %65 = tpu.matmul %64, %62, %cst_29 {dimension_numbers = #tpu.dot_dimension_numbers<[1], [0], [0], [1], [0, 0, 1, 1], [], []>} : vector<32x288xbf16>, vector<288x512xbf16>, vector<32x512xf32> -> vector<32x512xf32>
    %c1_30 = arith.constant 1 : index
    %c0_31 = arith.constant 0 : index
    %c0_32 = arith.constant 0 : index
    %66 = vector.load %arg3[%c1_30, %c0_31, %c0_32] : memref<3x32x1xf32, #tpu.memory_space<vmem>>, vector<1x32x1xf32>
    %67 = vector.shape_cast %66 : vector<1x32x1xf32> to vector<32x1xf32>
    %68 = vector.broadcast %67 : vector<32x1xf32> to vector<32x512xf32>
    %69 = arith.addf %65, %68 : vector<32x512xf32>
    %cst_33 = arith.constant 0.000000e+00 : f32
    %70 = vector.broadcast %cst_33 : f32 to vector<32x512xf32>
    %71 = arith.maximumf %69, %70 : vector<32x512xf32>
    %c34_i32 = arith.constant 34 : i32
    %72 = tpu.dynamic_rotate %71 by %c34_i32 dim 1 : vector<32x512xf32>, i32 -> vector<32x512xf32>
    %c1_34 = arith.constant 1 : index
    %c0_35 = arith.constant 0 : index
    %c0_36 = arith.constant 0 : index
    %73 = vector.load %arg4[%c1_34, %c0_35, %c0_36] : memref<2x9x512xf32, #tpu.memory_space<vmem>>, vector<1x1x512xf32>
    %74 = vector.shape_cast %73 : vector<1x1x512xf32> to vector<1x512xf32>
    %75 = vector.broadcast %74 : vector<1x512xf32> to vector<32x512xf32>
    %76 = arith.mulf %72, %75 : vector<32x512xf32>
    %77 = arith.truncf %76 : vector<32x512xf32> to vector<32x512xbf16>
    %c32_i32 = arith.constant 32 : i32
    %78 = tpu.dynamic_rotate %71 by %c32_i32 dim 1 : vector<32x512xf32>, i32 -> vector<32x512xf32>
    %c1_37 = arith.constant 1 : index
    %c1_38 = arith.constant 1 : index
    %c0_39 = arith.constant 0 : index
    %79 = vector.load %arg4[%c1_37, %c1_38, %c0_39] : memref<2x9x512xf32, #tpu.memory_space<vmem>>, vector<1x1x512xf32>
    %80 = vector.shape_cast %79 : vector<1x1x512xf32> to vector<1x512xf32>
    %81 = vector.broadcast %80 : vector<1x512xf32> to vector<32x512xf32>
    %82 = arith.mulf %78, %81 : vector<32x512xf32>
    %83 = arith.truncf %82 : vector<32x512xf32> to vector<32x512xbf16>
    %c30_i32 = arith.constant 30 : i32
    %84 = tpu.dynamic_rotate %71 by %c30_i32 dim 1 : vector<32x512xf32>, i32 -> vector<32x512xf32>
    %c1_40 = arith.constant 1 : index
    %c2_41 = arith.constant 2 : index
    %c0_42 = arith.constant 0 : index
    %85 = vector.load %arg4[%c1_40, %c2_41, %c0_42] : memref<2x9x512xf32, #tpu.memory_space<vmem>>, vector<1x1x512xf32>
    %86 = vector.shape_cast %85 : vector<1x1x512xf32> to vector<1x512xf32>
    %87 = vector.broadcast %86 : vector<1x512xf32> to vector<32x512xf32>
    %88 = arith.mulf %84, %87 : vector<32x512xf32>
    %89 = arith.truncf %88 : vector<32x512xf32> to vector<32x512xbf16>
    %c2_i32 = arith.constant 2 : i32
    %90 = tpu.dynamic_rotate %71 by %c2_i32 dim 1 : vector<32x512xf32>, i32 -> vector<32x512xf32>
    %c1_43 = arith.constant 1 : index
    %c3_44 = arith.constant 3 : index
    %c0_45 = arith.constant 0 : index
    %91 = vector.load %arg4[%c1_43, %c3_44, %c0_45] : memref<2x9x512xf32, #tpu.memory_space<vmem>>, vector<1x1x512xf32>
    %92 = vector.shape_cast %91 : vector<1x1x512xf32> to vector<1x512xf32>
    %93 = vector.broadcast %92 : vector<1x512xf32> to vector<32x512xf32>
    %94 = arith.mulf %90, %93 : vector<32x512xf32>
    %95 = arith.truncf %94 : vector<32x512xf32> to vector<32x512xbf16>
    %c1_46 = arith.constant 1 : index
    %c4_47 = arith.constant 4 : index
    %c0_48 = arith.constant 0 : index
    %96 = vector.load %arg4[%c1_46, %c4_47, %c0_48] : memref<2x9x512xf32, #tpu.memory_space<vmem>>, vector<1x1x512xf32>
    %97 = vector.shape_cast %96 : vector<1x1x512xf32> to vector<1x512xf32>
    %98 = vector.broadcast %97 : vector<1x512xf32> to vector<32x512xf32>
    %99 = arith.mulf %71, %98 : vector<32x512xf32>
    %100 = arith.truncf %99 : vector<32x512xf32> to vector<32x512xbf16>
    %c510_i32 = arith.constant 510 : i32
    %101 = tpu.dynamic_rotate %71 by %c510_i32 dim 1 : vector<32x512xf32>, i32 -> vector<32x512xf32>
    %c1_49 = arith.constant 1 : index
    %c5_50 = arith.constant 5 : index
    %c0_51 = arith.constant 0 : index
    %102 = vector.load %arg4[%c1_49, %c5_50, %c0_51] : memref<2x9x512xf32, #tpu.memory_space<vmem>>, vector<1x1x512xf32>
    %103 = vector.shape_cast %102 : vector<1x1x512xf32> to vector<1x512xf32>
    %104 = vector.broadcast %103 : vector<1x512xf32> to vector<32x512xf32>
    %105 = arith.mulf %101, %104 : vector<32x512xf32>
    %106 = arith.truncf %105 : vector<32x512xf32> to vector<32x512xbf16>
    %c482_i32 = arith.constant 482 : i32
    %107 = tpu.dynamic_rotate %71 by %c482_i32 dim 1 : vector<32x512xf32>, i32 -> vector<32x512xf32>
    %c1_52 = arith.constant 1 : index
    %c6_53 = arith.constant 6 : index
    %c0_54 = arith.constant 0 : index
    %108 = vector.load %arg4[%c1_52, %c6_53, %c0_54] : memref<2x9x512xf32, #tpu.memory_space<vmem>>, vector<1x1x512xf32>
    %109 = vector.shape_cast %108 : vector<1x1x512xf32> to vector<1x512xf32>
    %110 = vector.broadcast %109 : vector<1x512xf32> to vector<32x512xf32>
    %111 = arith.mulf %107, %110 : vector<32x512xf32>
    %112 = arith.truncf %111 : vector<32x512xf32> to vector<32x512xbf16>
    %c480_i32 = arith.constant 480 : i32
    %113 = tpu.dynamic_rotate %71 by %c480_i32 dim 1 : vector<32x512xf32>, i32 -> vector<32x512xf32>
    %c1_55 = arith.constant 1 : index
    %c7_56 = arith.constant 7 : index
    %c0_57 = arith.constant 0 : index
    %114 = vector.load %arg4[%c1_55, %c7_56, %c0_57] : memref<2x9x512xf32, #tpu.memory_space<vmem>>, vector<1x1x512xf32>
    %115 = vector.shape_cast %114 : vector<1x1x512xf32> to vector<1x512xf32>
    %116 = vector.broadcast %115 : vector<1x512xf32> to vector<32x512xf32>
    %117 = arith.mulf %113, %116 : vector<32x512xf32>
    %118 = arith.truncf %117 : vector<32x512xf32> to vector<32x512xbf16>
    %c478_i32 = arith.constant 478 : i32
    %119 = tpu.dynamic_rotate %71 by %c478_i32 dim 1 : vector<32x512xf32>, i32 -> vector<32x512xf32>
    %c1_58 = arith.constant 1 : index
    %c8_59 = arith.constant 8 : index
    %c0_60 = arith.constant 0 : index
    %120 = vector.load %arg4[%c1_58, %c8_59, %c0_60] : memref<2x9x512xf32, #tpu.memory_space<vmem>>, vector<1x1x512xf32>
    %121 = vector.shape_cast %120 : vector<1x1x512xf32> to vector<1x512xf32>
    %122 = vector.broadcast %121 : vector<1x512xf32> to vector<32x512xf32>
    %123 = arith.mulf %119, %122 : vector<32x512xf32>
    %124 = arith.truncf %123 : vector<32x512xf32> to vector<32x512xbf16>
    %125 = tpu.concatenate %77, %83, %89, %95, %100, %106, %112, %118, %124 in 0 : vector<32x512xbf16>, vector<32x512xbf16>, vector<32x512xbf16>, vector<32x512xbf16>, vector<32x512xbf16>, vector<32x512xbf16>, vector<32x512xbf16>, vector<32x512xbf16>, vector<32x512xbf16> -> vector<288x512xbf16>
    %c1_61 = arith.constant 1 : index
    %c0_62 = arith.constant 0 : index
    %c0_63 = arith.constant 0 : index
    %126 = vector.load %arg2[%c1_61, %c0_62, %c0_63] : memref<2x32x288xbf16, #tpu.memory_space<vmem>>, vector<1x32x288xbf16>
    %127 = vector.shape_cast %126 : vector<1x32x288xbf16> to vector<32x288xbf16>
    %cst_64 = arith.constant dense<0.000000e+00> : vector<32x512xf32>
    %128 = tpu.matmul %127, %125, %cst_64 {dimension_numbers = #tpu.dot_dimension_numbers<[1], [0], [0], [1], [0, 0, 1, 1], [], []>} : vector<32x288xbf16>, vector<288x512xbf16>, vector<32x512xf32> -> vector<32x512xf32>
    %c2_65 = arith.constant 2 : index
    %c0_66 = arith.constant 0 : index
    %c0_67 = arith.constant 0 : index
    %129 = vector.load %arg3[%c2_65, %c0_66, %c0_67] : memref<3x32x1xf32, #tpu.memory_space<vmem>>, vector<1x32x1xf32>
    %130 = vector.shape_cast %129 : vector<1x32x1xf32> to vector<32x1xf32>
    %131 = vector.broadcast %130 : vector<32x1xf32> to vector<32x512xf32>
    %132 = arith.addf %128, %131 : vector<32x512xf32>
    %cst_68 = arith.constant 0.000000e+00 : f32
    %133 = vector.broadcast %cst_68 : f32 to vector<32x512xf32>
    %134 = arith.maximumf %132, %133 : vector<32x512xf32>
    %135 = arith.addf %8, %134 : vector<32x512xf32>
    %c0_69 = arith.constant 0 : index
    %c0_70 = arith.constant 0 : index
    %136 = vector.load %arg5[%c0_69, %c0_70] : memref<32x512xf32, #tpu.memory_space<vmem>>, vector<32x512xf32>
    tpu.vector_store %arg5[%c0_69, %c0_70], %135 {strides = array<i32>} : memref<32x512xf32, #tpu.memory_space<vmem>>, vector<32x512xf32>,
    return
  }
}

</mosaic_0001>

<llo_original>
// kernel: refinement_stage_block_cm.1
$region0: #{refinement_stage_block_cm.1}
  #allocation0 [shape = 'u32[]', space=smem, size = 0x4, offset = 0x4, fixed_abs, tag = 'smem constant byte address 0x4 - core index']
  #allocation1 [shape = 'u32[144,128]{1,0:T(1,128)}', space=vmem, size = 0x12000, scoped, tag = 'internal scratch']
  %s0 = inlined_call_operand.vmem [shape: f32[16,512], index: 0, kind: input, shape index: {}]
  %s1 = inlined_call_operand.vmem [shape: f32[32,16], index: 1, kind: input, shape index: {}]
  %s2 = inlined_call_operand.vmem [shape: bf16[2,32,288], index: 2, kind: input, shape index: {}]
  %s3 = inlined_call_operand.vmem [shape: f32[3,32,1], index: 3, kind: input, shape index: {}]
  %s4 = inlined_call_operand.vmem [shape: f32[2,9,512], index: 4, kind: input, shape index: {}]
  %s5 = inlined_call_operand.hbm [shape: f32[32,512], index: 5, kind: output, shape index: {}]
  %s6 = sld [smem:[#allocation0]]
  $region30: #{refinement_stage_block_cm.1} parent=0
    _
  %s8 = ssub.s32 1, %s6
  %s9 = scalar_select 0, %s8, %s6
  $region1: #{refinement_stage_block_cm.1} parent=0
    #allocation2 [shape = 'u8[65536]{0}', space=vmem, size = 0x10000, scoped, tag = 'output window, operand 0, single buffered']
    #allocation3 [shape = 's32[1]{0}', space=sflag, size = 0x4, scoped, tag = 'scoped memory for refinement_stage_block_cm.1']
    %10 = vsyncpa [#allocation3], 0
    // Predicated region
    $region2: #{refinement_stage_block_cm.1} parent=1 // pred_check
      _
    $region3: #{refinement_stage_block_cm.1} parent=1 // pred_check_branch
      %12 = sbr.rel (0) target = $region5
    $region4: #{refinement_stage_block_cm.1} parent=1 // pred_region
      _
    $region5: #{refinement_stage_block_cm.1} parent=1 // pred_fallthru
      _
    // Predicated region
    $region6: #{refinement_stage_block_cm.1} parent=1 // pred_check
      _
    $region7: #{refinement_stage_block_cm.1} parent=1 // pred_check_branch
      %14 = sbr.rel (0) target = $region9
    $region8: #{refinement_stage_block_cm.1} parent=1 // pred_region
      _
    $region9: #{refinement_stage_block_cm.1} parent=1 // pred_fallthru
      _
    // Predicated region
    $region10: #{refinement_stage_block_cm.1} parent=1 // pred_check
      _
    $region11: #{refinement_stage_block_cm.1} parent=1 // pred_check_branch
      %16 = sbr.rel (0) target = $region13
    $region12: #{refinement_stage_block_cm.1} parent=1 // pred_region
      _
    $region13: #{refinement_stage_block_cm.1} parent=1 // pred_fallthru
      _
    // Predicated region
    $region14: #{refinement_stage_block_cm.1} parent=1 // pred_check
      _
    $region15: #{refinement_stage_block_cm.1} parent=1 // pred_check_branch
      %18 = sbr.rel (0) target = $region17
    $region16: #{refinement_stage_block_cm.1} parent=1 // pred_region
      _
    $region17: #{refinement_stage_block_cm.1} parent=1 // pred_fallthru
      _
    // Predicated region
    $region18: #{refinement_stage_block_cm.1} parent=1 // pred_check
      _
    $region19: #{refinement_stage_block_cm.1} parent=1 // pred_check_branch
      %20 = sbr.rel (0) target = $region21
    $region20: #{refinement_stage_block_cm.1} parent=1 // pred_region
      _
    $region21: #{refinement_stage_block_cm.1} parent=1 // pred_fallthru
      _
    %v22 = vld [vmem:[%s1] sm:$0xff]
    %v23 = vld [vmem:[%s1 + $0x8] sm:$0xff]
    %v24 = vld [vmem:[%s1 + $0x10] sm:$0xff]
    %v25 = vld [vmem:[%s1 + $0x18] sm:$0xff]
    %v26 = vld [vmem:[%s0] sm:$0xff]
    %v27 = vld [vmem:[%s0 + $0x8] sm:$0xff]
    %v28 = vld [vmem:[%s0 + $0x10] sm:$0xff]
    %v29 = vld [vmem:[%s0 + $0x18] sm:$0xff]
    %v30 = vld [vmem:[%s0 + $0x20] sm:$0xff]
    %v31 = vld [vmem:[%s0 + $0x28] sm:$0xff]
    %v32 = vld [vmem:[%s0 + $0x30] sm:$0xff]
    %v33 = vld [vmem:[%s0 + $0x38] sm:$0xff]
    %v34 = vld [vmem:[%s3] sm:$0xff]
    %v35 = vld [vmem:[%s3 + $0x8] sm:$0xff]
    %v36 = vld [vmem:[%s3 + $0x10] sm:$0xff]
    %v37 = vld [vmem:[%s3 + $0x18] sm:$0xff]
    %39 = vset.pattern.permute.xlu0 0
    %40 = vperm.xlu0 %39, %v34
    %v41 = vpop.permute.xlu0 %40
    %44 = vset.pattern.permute.xlu0 0
    %45 = vperm.xlu0 %44, %v35
    %v46 = vpop.permute.xlu0 %45
    %49 = vset.pattern.permute.xlu0 0
    %50 = vperm.xlu0 %49, %v36
    %v51 = vpop.permute.xlu0 %50
    %54 = vset.pattern.permute.xlu0 0
    %55 = vperm.xlu0 %54, %v37
    %v56 = vpop.permute.xlu0 %55
    %vm58 = vcmask 130048
    %v60 = vsel %vm58, %v22, 0
    %v63 = vsel %vm58, %v23, 0
    %v66 = vsel %vm58, %v24, 0
    %v69 = vsel %vm58, %v25, 0
    %71 = vmatprep.subr.mxu0 %v27
    %72 = vmatpush1.msra.mxu0 %v26
    %73 = vmatprep.subr.mxu0 %v31
    %74 = vmatpush1.msra.mxu0 %v30
    %75 = vmatprep.subr.mxu0 0.0
    %76 = vmatpush1.msra.mxu0 0.0
    %77 = vmatprep.subr.mxu0 0.0
    %78 = vmatpush1.msra.mxu0 0.0
    %79 = vmatprep.subr.mxu0 0.0
    %80 = vmatpush1.msra.mxu0 0.0
    %81 = vmatprep.subr.mxu0 0.0
    %82 = vmatpush1.msra.mxu0 0.0
    %83 = vmatprep.subr.mxu0 0.0
    %84 = vmatpush1.msra.mxu0 0.0
    %85 = vmatprep.subr.mxu0 0.0
    %86 = vmatpush1.msra.mxu0 0.0
    %87 = vmatprep.subr.mxu0 0.0
    %88 = vmatpush1.msra.mxu0 0.0
    %89 = vmatprep.subr.mxu0 0.0
    %90 = vmatpush1.msra.mxu0 0.0
    %91 = vmatprep.subr.mxu0 0.0
    %92 = vmatpush1.msra.mxu0 0.0
    %93 = vmatprep.subr.mxu0 0.0
    %94 = vmatpush1.msra.mxu0 0.0
    %95 = vmatprep.subr.mxu0 0.0
    %96 = vmatpush1.msra.mxu0 0.0
    %97 = vmatprep.subr.mxu0 0.0
    %98 = vmatpush1.msra.mxu0 0.0
    %99 = vmatprep.subr.mxu0 0.0
    %100 = vmatpush1.msra.mxu0 0.0
    %101 = vmatprep.subr.mxu0 0.0
    %102 = vmatpush1.msra.mxu0 0.0
    %103 = vmatprep.subr.mxu0 0.0
    %104 = vmatpush1.msra.mxu0 0.0
    %105 = vmatprep.subr.mxu0 0.0
    %106 = vmatpush1.msra.mxu0 0.0
    %107 = vmatprep.subr.mxu0 0.0
    %108 = vmatpush1.msra.mxu0 0.0
    %109 = vmatprep.subr.mxu0 0.0
    %110 = vmatpush1.msra.mxu0 0.0
    %111 = vmatprep.subr.mxu0 0.0
    %112 = vmatpush1.msra.mxu0 0.0
    %113 = vmatprep.subr.mxu0 0.0
    %114 = vmatpush1.msra.mxu0 0.0
    %115 = vmatprep.subr.mxu0 0.0
    %116 = vmatpush1.msra.mxu0 0.0
    %117 = vmatprep.subr.mxu0 0.0
    %118 = vmatpush1.msra.mxu0 0.0
    %119 = vmatprep.subr.mxu0 0.0
    %120 = vmatpush1.msra.mxu0 0.0
    %121 = vmatprep.subr.mxu0 0.0
    %122 = vmatpush1.msra.mxu0 0.0
    %123 = vmatprep.subr.mxu0 0.0
    %124 = vmatpush1.msra.mxu0 0.0
    %125 = vmatprep.subr.mxu0 0.0
    %126 = vmatpush1.msra.mxu0 0.0
    %127 = vmatprep.subr.mxu0 0.0
    %128 = vmatpush1.msra.mxu0 0.0
    %129 = vmatprep.subr.mxu0 0.0
    %130 = vmatpush1.msra.mxu0 0.0
    %131 = vmatprep.subr.mxu0 0.0
    %132 = vmatpush1.msra.mxu0 0.0
    %133 = vmatprep.subr.mxu0 0.0
    %134 = vmatpush1.msra.mxu0 0.0
    %135 = vmatprep.mubr.f32.mxu0 0.0
    %136 = vmatmul.mubr.f32.gmra.mrb[0].mxu0 %v60
    %v137 = vpop.f32.mrb[0].mxu0
    %v138 = vadd.f32 %v41, %v137
    %v139 = vpop.f32.mrb[0].mxu0
    %v140 = vadd.f32 %v41, %v139
    %141 = vmatprep.mubr.f32.mxu0 0.0
    %142 = vmatmul.mubr.f32.gmra.mrb[0].mxu0 %v63
    %v143 = vpop.f32.mrb[0].mxu0
    %v144 = vadd.f32 %v46, %v143
    %v145 = vpop.f32.mrb[0].mxu0
    %v146 = vadd.f32 %v46, %v145
    %147 = vmatprep.mubr.f32.mxu0 0.0
    %148 = vmatmul.mubr.f32.gmra.mrb[0].mxu0 %v66
    %v149 = vpop.f32.mrb[0].mxu0
    %v150 = vadd.f32 %v51, %v149
    %v151 = vpop.f32.mrb[0].mxu0
    %v152 = vadd.f32 %v51, %v151
    %153 = vmatprep.mubr.f32.mxu0 0.0
    %154 = vmatmul.mubr.f32.gmra.mrb[0].mxu0 %v69
    %v155 = vpop.f32.mrb[0].mxu0
    %v156 = vadd.f32 %v56, %v155
    %v157 = vpop.f32.mrb[0].mxu0
    %v158 = vadd.f32 %v56, %v157
    %159 = vdwg.mxu0
    %160 = vmatprep.subr.mxu0 %v29
    %161 = vmatpush1.msra.mxu0 %v28
    %162 = vmatprep.subr.mxu0 %v33
    %163 = vmatpush1.msra.mxu0 %v32
    %164 = vmatprep.subr.mxu0 0.0
    %165 = vmatpush1.msra.mxu0 0.0
    %166 = vmatprep.subr.mxu0 0.0
    %167 = vmatpush1.msra.mxu0 0.0
    %168 = vmatprep.subr.mxu0 0.0
    %169 = vmatpush1.msra.mxu0 0.0
    %170 = vmatprep.subr.mxu0 0.0
    %171 = vmatpush1.msra.mxu0 0.0
    %172 = vmatprep.subr.mxu0 0.0
    %173 = vmatpush1.msra.mxu0 0.0
    %174 = vmatprep.subr.mxu0 0.0
    %175 = vmatpush1.msra.mxu0 0.0
    %176 = vmatprep.subr.mxu0 0.0
    %177 = vmatpush1.msra.mxu0 0.0
    %178 = vmatprep.subr.mxu0 0.0
    %179 = vmatpush1.msra.mxu0 0.0
    %180 = vmatprep.subr.mxu0 0.0
    %181 = vmatpush1.msra.mxu0 0.0
    %182 = vmatprep.subr.mxu0 0.0
    %183 = vmatpush1.msra.mxu0 0.0
    %184 = vmatprep.subr.mxu0 0.0
    %185 = vmatpush1.msra.mxu0 0.0
    %186 = vmatprep.subr.mxu0 0.0
    %187 = vmatpush1.msra.mxu0 0.0
    %188 = vmatprep.subr.mxu0 0.0
    %189 = vmatpush1.msra.mxu0 0.0
    %190 = vmatprep.subr.mxu0 0.0
    %191 = vmatpush1.msra.mxu0 0.0
    %192 = vmatprep.subr.mxu0 0.0
    %193 = vmatpush1.msra.mxu0 0.0
    %194 = vmatprep.subr.mxu0 0.0
    %195 = vmatpush1.msra.mxu0 0.0
    %196 = vmatprep.subr.mxu0 0.0
    %197 = vmatpush1.msra.mxu0 0.0
    %198 = vmatprep.subr.mxu0 0.0
    %199 = vmatpush1.msra.mxu0 0.0
    %200 = vmatprep.subr.mxu0 0.0
    %201 = vmatpush1.msra.mxu0 0.0
    %202 = vmatprep.subr.mxu0 0.0
    %203 = vmatpush1.msra.mxu0 0.0
    %204 = vmatprep.subr.mxu0 0.0
    %205 = vmatpush1.msra.mxu0 0.0
    %206 = vmatprep.subr.mxu0 0.0
    %207 = vmatpush1.msra.mxu0 0.0
    %208 = vmatprep.subr.mxu0 0.0
    %209 = vmatpush1.msra.mxu0 0.0
    %210 = vmatprep.subr.mxu0 0.0
    %211 = vmatpush1.msra.mxu0 0.0
    %212 = vmatprep.subr.mxu0 0.0
    %213 = vmatpush1.msra.mxu0 0.0
    %214 = vmatprep.subr.mxu0 0.0
    %215 = vmatpush1.msra.mxu0 0.0
    %216 = vmatprep.subr.mxu0 0.0
    %217 = vmatpush1.msra.mxu0 0.0
    %218 = vmatprep.subr.mxu0 0.0
    %219 = vmatpush1.msra.mxu0 0.0
    %220 = vmatprep.subr.mxu0 0.0
    %221 = vmatpush1.msra.mxu0 0.0
    %222 = vmatprep.subr.mxu0 0.0
    %223 = vmatpush1.msra.mxu0 0.0
    %224 = vmatprep.mubr.f32.mxu0 0.0
    %225 = vmatmul.mubr.f32.gmra.mrb[0].mxu0 %v60
    %v226 = vpop.f32.mrb[0].mxu0
    %v227 = vadd.f32 %v41, %v226
    %v228 = vpop.f32.mrb[0].mxu0
    %v229 = vadd.f32 %v41, %v228
    %230 = vmatprep.mubr.f32.mxu0 0.0
    %231 = vmatmul.mubr.f32.gmra.mrb[0].mxu0 %v63
    %v232 = vpop.f32.mrb[0].mxu0
    %v233 = vadd.f32 %v46, %v232
    %v234 = vpop.f32.mrb[0].mxu0
    %v235 = vadd.f32 %v46, %v234
    %236 = vmatprep.mubr.f32.mxu0 0.0
    %237 = vmatmul.mubr.f32.gmra.mrb[0].mxu0 %v66
    %v238 = vpop.f32.mrb[0].mxu0
    %v239 = vadd.f32 %v51, %v238
    %v240 = vpop.f32.mrb[0].mxu0
    %v241 = vadd.f32 %v51, %v240
    %242 = vmatprep.mubr.f32.mxu0 0.0
    %243 = vmatmul.mubr.f32.gmra.mrb[0].mxu0 %v69
    %v244 = vpop.f32.mrb[0].mxu0
    %v245 = vadd.f32 %v56, %v244
    %v246 = vpop.f32.mrb[0].mxu0
    %v247 = vadd.f32 %v56, %v246
    %248 = vdwg.mxu0
    %v249 = vmax.f32 %v138, 0.0
    %v250 = vmax.f32 %v140, 0.0
    %v251 = vmax.f32 %v227, 0.0
    %v252 = vmax.f32 %v229, 0.0
    %v253 = vmax.f32 %v144, 0.0
    %v254 = vmax.f32 %v146, 0.0
    %v255 = vmax.f32 %v233, 0.0
    %v256 = vmax.f32 %v235, 0.0
    %v257 = vmax.f32 %v150, 0.0
    %v258 = vmax.f32 %v152, 0.0
    %v259 = vmax.f32 %v239, 0.0
    %v260 = vmax.f32 %v241, 0.0
    %v261 = vmax.f32 %v156, 0.0
    %v262 = vmax.f32 %v158, 0.0
    %v263 = vmax.f32 %v245, 0.0
    %v264 = vmax.f32 %v247, 0.0
    %265 = vrot.lane.b32.xlu0 %v249, 17
    %v266 = vpop.permute.xlu0 %265
    %267 = vrot.lane.b32.xlu0 %v253, 17
    %v268 = vpop.permute.xlu0 %267
    %269 = vrot.lane.b32.xlu0 %v257, 17
    %v270 = vpop.permute.xlu0 %269
    %271 = vrot.lane.b32.xlu0 %v261, 17
    %v272 = vpop.permute.xlu0 %271
    %273 = vrot.lane.b32.xlu0 %v250, 17
    %v274 = vpop.permute.xlu0 %273
    %275 = vrot.lane.b32.xlu0 %v254, 17
    %v276 = vpop.permute.xlu0 %275
    %277 = vrot.lane.b32.xlu0 %v258, 17
    %v278 = vpop.permute.xlu0 %277
    %279 = vrot.lane.b32.xlu0 %v262, 17
    %v280 = vpop.permute.xlu0 %279
    %281 = vrot.lane.b32.xlu0 %v251, 17
    %v282 = vpop.permute.xlu0 %281
    %283 = vrot.lane.b32.xlu0 %v255, 17
    %v284 = vpop.permute.xlu0 %283
    %285 = vrot.lane.b32.xlu0 %v259, 17
    %v286 = vpop.permute.xlu0 %285
    %287 = vrot.lane.b32.xlu0 %v263, 17
    %v288 = vpop.permute.xlu0 %287
    %289 = vrot.lane.b32.xlu0 %v252, 17
    %v290 = vpop.permute.xlu0 %289
    %291 = vrot.lane.b32.xlu0 %v256, 17
    %v292 = vpop.permute.xlu0 %291
    %293 = vrot.lane.b32.xlu0 %v260, 17
    %v294 = vpop.permute.xlu0 %293
    %295 = vrot.lane.b32.xlu0 %v264, 17
    %v296 = vpop.permute.xlu0 %295
    %v297 = vlaneseq
    %v298 = vand.u32 %v297, 127
    %vm299 = vcmp.lt.s32.totalorder %v298, 17
    %v300 = vsel %vm299, %v282, %v290
    %v301 = vsel %vm299, %v284, %v292
    %v302 = vsel %vm299, %v286, %v294
    %v303 = vsel %vm299, %v288, %v296
    %v304 = vsel %vm299, %v274, %v282
    %v305 = vsel %vm299, %v276, %v284
    %v306 = vsel %vm299, %v278, %v286
    %v307 = vsel %vm299, %v280, %v288
    %v308 = vsel %vm299, %v266, %v274
    %v309 = vsel %vm299, %v268, %v276
    %v310 = vsel %vm299, %v270, %v278
    %v311 = vsel %vm299, %v272, %v280
    %v312 = vsel %vm299, %v290, %v266
    %v313 = vsel %vm299, %v292, %v268
    %v314 = vsel %vm299, %v294, %v270
    %v315 = vsel %vm299, %v296, %v272
    %v316 = vld [vmem:[%s4] ss:$8 sm:$0xf]
    %v318 = vlaneseq
    %v319 = vshrl.u32 %v318, 7
    %v320 = vsub.s32 0, %v319
    %v321 = vrot.slane %v316, %v320
    %v322 = vlaneseq
    %v323 = vshrl.u32 %v322, 7
    %v324 = vsub.s32 1, %v323
    %v325 = vrot.slane %v316, %v324
    %v326 = vlaneseq
    %v327 = vshrl.u32 %v326, 7
    %v328 = vsub.s32 2, %v327
    %v329 = vrot.slane %v316, %v328
    %v330 = vlaneseq
    %v331 = vshrl.u32 %v330, 7
    %v332 = vsub.s32 3, %v331
    %v333 = vrot.slane %v316, %v332
    %v338 = vmul.f32 %v312, %v321
    %v339 = vmul.f32 %v308, %v325
    %v340 = vmul.f32 %v304, %v329
    %v341 = vmul.f32 %v300, %v333
    %v342 = vmul.f32 %v313, %v321
    %v343 = vmul.f32 %v309, %v325
    %v344 = vmul.f32 %v305, %v329
    %v345 = vmul.f32 %v301, %v333
    %v346 = vmul.f32 %v314, %v321
    %v347 = vmul.f32 %v310, %v325
    %v348 = vmul.f32 %v306, %v329
    %v349 = vmul.f32 %v302, %v333
    %v350 = vmul.f32 %v315, %v321
    %v351 = vmul.f32 %v311, %v325
    %v352 = vmul.f32 %v307, %v329
    %v353 = vmul.f32 %v303, %v333
    %v354 = vpack.c.bf16 %v342, %v338
    %v355 = vpack.c.bf16 %v343, %v339
    %v356 = vpack.c.bf16 %v344, %v340
    %v357 = vpack.c.bf16 %v345, %v341
    %v358 = vpack.c.bf16 %v350, %v346
    %v359 = vpack.c.bf16 %v351, %v347
    %v360 = vpack.c.bf16 %v352, %v348
    %v361 = vpack.c.bf16 %v353, %v349
    %362 = vrot.lane.b32.xlu0 %v249, 16
    %v363 = vpop.permute.xlu0 %362
    %364 = vrot.lane.b32.xlu0 %v253, 16
    %v365 = vpop.permute.xlu0 %364
    %366 = vrot.lane.b32.xlu0 %v257, 16
    %v367 = vpop.permute.xlu0 %366
    %368 = vrot.lane.b32.xlu0 %v261, 16
    %v369 = vpop.permute.xlu0 %368
    %370 = vrot.lane.b32.xlu0 %v250, 16
    %v371 = vpop.permute.xlu0 %370
    %372 = vrot.lane.b32.xlu0 %v254, 16
    %v373 = vpop.permute.xlu0 %372
    %374 = vrot.lane.b32.xlu0 %v258, 16
    %v375 = vpop.permute.xlu0 %374
    %376 = vrot.lane.b32.xlu0 %v262, 16
    %v377 = vpop.permute.xlu0 %376
    %378 = vrot.lane.b32.xlu0 %v251, 16
    %v379 = vpop.permute.xlu0 %378
    %380 = vrot.lane.b32.xlu0 %v255, 16
    %v381 = vpop.permute.xlu0 %380
    %382 = vrot.lane.b32.xlu0 %v259, 16
    %v383 = vpop.permute.xlu0 %382
    %384 = vrot.lane.b32.xlu0 %v263, 16
    %v385 = vpop.permute.xlu0 %384
    %386 = vrot.lane.b32.xlu0 %v252, 16
    %v387 = vpop.permute.xlu0 %386
    %388 = vrot.lane.b32.xlu0 %v256, 16
    %v389 = vpop.permute.xlu0 %388
    %390 = vrot.lane.b32.xlu0 %v260, 16
    %v391 = vpop.permute.xlu0 %390
    %392 = vrot.lane.b32.xlu0 %v264, 16
    %v393 = vpop.permute.xlu0 %392
    %vm394 = vcmp.lt.s32.totalorder %v298, 16
    %v395 = vsel %vm394, %v379, %v387
    %v396 = vsel %vm394, %v381, %v389
    %v397 = vsel %vm394, %v383, %v391
    %v398 = vsel %vm394, %v385, %v393
    %v399 = vsel %vm394, %v371, %v379
    %v400 = vsel %vm394, %v373, %v381
    %v401 = vsel %vm394, %v375, %v383
    %v402 = vsel %vm394, %v377, %v385
    %v403 = vsel %vm394, %v363, %v371
    %v404 = vsel %vm394, %v365, %v373
    %v405 = vsel %vm394, %v367, %v375
    %v406 = vsel %vm394, %v369, %v377
    %v407 = vsel %vm394, %v387, %v363
    %v408 = vsel %vm394, %v389, %v365
    %v409 = vsel %vm394, %v391, %v367
    %v410 = vsel %vm394, %v393, %v369
    %s411 = scalar_lea.vmem %s4, 1
    %v412 = vld [vmem:[%s411] ss:$8 sm:$0xf]
    %v414 = vlaneseq
    %v415 = vshrl.u32 %v414, 7
    %v416 = vsub.s32 0, %v415
    %v417 = vrot.slane %v412, %v416
    %v418 = vlaneseq
    %v419 = vshrl.u32 %v418, 7
    %v420 = vsub.s32 1, %v419
    %v421 = vrot.slane %v412, %v420
    %v422 = vlaneseq
    %v423 = vshrl.u32 %v422, 7
    %v424 = vsub.s32 2, %v423
    %v425 = vrot.slane %v412, %v424
    %v426 = vlaneseq
    %v427 = vshrl.u32 %v426, 7
    %v428 = vsub.s32 3, %v427
    %v429 = vrot.slane %v412, %v428
    %v434 = vmul.f32 %v407, %v417
    %v435 = vmul.f32 %v403, %v421
    %v436 = vmul.f32 %v399, %v425
    %v437 = vmul.f32 %v395, %v429
    %v438 = vmul.f32 %v408, %v417
    %v439 = vmul.f32 %v404, %v421
    %v440 = vmul.f32 %v400, %v425
    %v441 = vmul.f32 %v396, %v429
    %v442 = vmul.f32 %v409, %v417
    %v443 = vmul.f32 %v405, %v421
    %v444 = vmul.f32 %v401, %v425
    %v445 = vmul.f32 %v397, %v429
    %v446 = vmul.f32 %v410, %v417
    %v447 = vmul.f32 %v406, %v421
    %v448 = vmul.f32 %v402, %v425
    %v449 = vmul.f32 %v398, %v429
    %v450 = vpack.c.bf16 %v438, %v434
    %v451 = vpack.c.bf16 %v439, %v435
    %v452 = vpack.c.bf16 %v440, %v436
    %v453 = vpack.c.bf16 %v441, %v437
    %v454 = vpack.c.bf16 %v446, %v442
    %v455 = vpack.c.bf16 %v447, %v443
    %v456 = vpack.c.bf16 %v448, %v444
    %v457 = vpack.c.bf16 %v449, %v445
    %458 = vrot.lane.b32.xlu0 %v249, 15
    %v459 = vpop.permute.xlu0 %458
    %460 = vrot.lane.b32.xlu0 %v253, 15
    %v461 = vpop.permute.xlu0 %460
    %462 = vrot.lane.b32.xlu0 %v257, 15
    %v463 = vpop.permute.xlu0 %462
    %464 = vrot.lane.b32.xlu0 %v261, 15
    %v465 = vpop.permute.xlu0 %464
    %466 = vrot.lane.b32.xlu0 %v250, 15
    %v467 = vpop.permute.xlu0 %466
    %468 = vrot.lane.b32.xlu0 %v254, 15
    %v469 = vpop.permute.xlu0 %468
    %470 = vrot.lane.b32.xlu0 %v258, 15
    %v471 = vpop.permute.xlu0 %470
    %472 = vrot.lane.b32.xlu0 %v262, 15
    %v473 = vpop.permute.xlu0 %472
    %474 = vrot.lane.b32.xlu0 %v251, 15
    %v475 = vpop.permute.xlu0 %474
    %476 = vrot.lane.b32.xlu0 %v255, 15
    %v477 = vpop.permute.xlu0 %476
    %478 = vrot.lane.b32.xlu0 %v259, 15
    %v479 = vpop.permute.xlu0 %478
    %480 = vrot.lane.b32.xlu0 %v263, 15
    %v481 = vpop.permute.xlu0 %480
    %482 = vrot.lane.b32.xlu0 %v252, 15
    %v483 = vpop.permute.xlu0 %482
    %484 = vrot.lane.b32.xlu0 %v256, 15
    %v485 = vpop.permute.xlu0 %484
    %486 = vrot.lane.b32.xlu0 %v260, 15
    %v487 = vpop.permute.xlu0 %486
    %488 = vrot.lane.b32.xlu0 %v264, 15
    %v489 = vpop.permute.xlu0 %488
    %vm490 = vcmp.lt.s32.totalorder %v298, 15
    %v491 = vsel %vm490, %v475, %v483
    %v492 = vsel %vm490, %v477, %v485
    %v493 = vsel %vm490, %v479, %v487
    %v494 = vsel %vm490, %v481, %v489
    %v495 = vsel %vm490, %v467, %v475
    %v496 = vsel %vm490, %v469, %v477
    %v497 = vsel %vm490, %v471, %v479
    %v498 = vsel %vm490, %v473, %v481
    %v499 = vsel %vm490, %v459, %v467
    %v500 = vsel %vm490, %v461, %v469
    %v501 = vsel %vm490, %v463, %v471
    %v502 = vsel %vm490, %v465, %v473
    %v503 = vsel %vm490, %v483, %v459
    %v504 = vsel %vm490, %v485, %v461
    %v505 = vsel %vm490, %v487, %v463
    %v506 = vsel %vm490, %v489, %v465
    %s507 = scalar_lea.vmem %s4, 2
    %v508 = vld [vmem:[%s507] ss:$8 sm:$0xf]
    %v510 = vlaneseq
    %v511 = vshrl.u32 %v510, 7
    %v512 = vsub.s32 0, %v511
    %v513 = vrot.slane %v508, %v512
    %v514 = vlaneseq
    %v515 = vshrl.u32 %v514, 7
    %v516 = vsub.s32 1, %v515
    %v517 = vrot.slane %v508, %v516
    %v518 = vlaneseq
    %v519 = vshrl.u32 %v518, 7
    %v520 = vsub.s32 2, %v519
    %v521 = vrot.slane %v508, %v520
    %v522 = vlaneseq
    %v523 = vshrl.u32 %v522, 7
    %v524 = vsub.s32 3, %v523
    %v525 = vrot.slane %v508, %v524
    %v530 = vmul.f32 %v503, %v513
    %v531 = vmul.f32 %v499, %v517
    %v532 = vmul.f32 %v495, %v521
    %v533 = vmul.f32 %v491, %v525
    %v534 = vmul.f32 %v504, %v513
    %v535 = vmul.f32 %v500, %v517
    %v536 = vmul.f32 %v496, %v521
    %v537 = vmul.f32 %v492, %v525
    %v538 = vmul.f32 %v505, %v513
    %v539 = vmul.f32 %v501, %v517
    %v540 = vmul.f32 %v497, %v521
    %v541 = vmul.f32 %v493, %v525
    %v542 = vmul.f32 %v506, %v513
    %v543 = vmul.f32 %v502, %v517
    %v544 = vmul.f32 %v498, %v521
    %v545 = vmul.f32 %v494, %v525
    %v546 = vpack.c.bf16 %v534, %v530
    %v547 = vpack.c.bf16 %v535, %v531
    %v548 = vpack.c.bf16 %v536, %v532
    %v549 = vpack.c.bf16 %v537, %v533
    %v550 = vpack.c.bf16 %v542, %v538
    %v551 = vpack.c.bf16 %v543, %v539
    %v552 = vpack.c.bf16 %v544, %v540
    %v553 = vpack.c.bf16 %v545, %v541
    %554 = vrot.lane.b32.xlu0 %v249, 1
    %v555 = vpop.permute.xlu0 %554
    %556 = vrot.lane.b32.xlu0 %v253, 1
    %v557 = vpop.permute.xlu0 %556
    %558 = vrot.lane.b32.xlu0 %v257, 1
    %v559 = vpop.permute.xlu0 %558
    %560 = vrot.lane.b32.xlu0 %v261, 1
    %v561 = vpop.permute.xlu0 %560
    %562 = vrot.lane.b32.xlu0 %v250, 1
    %v563 = vpop.permute.xlu0 %562
    %564 = vrot.lane.b32.xlu0 %v254, 1
    %v565 = vpop.permute.xlu0 %564
    %566 = vrot.lane.b32.xlu0 %v258, 1
    %v567 = vpop.permute.xlu0 %566
    %568 = vrot.lane.b32.xlu0 %v262, 1
    %v569 = vpop.permute.xlu0 %568
    %570 = vrot.lane.b32.xlu0 %v251, 1
    %v571 = vpop.permute.xlu0 %570
    %572 = vrot.lane.b32.xlu0 %v255, 1
    %v573 = vpop.permute.xlu0 %572
    %574 = vrot.lane.b32.xlu0 %v259, 1
    %v575 = vpop.permute.xlu0 %574
    %576 = vrot.lane.b32.xlu0 %v263, 1
    %v577 = vpop.permute.xlu0 %576
    %578 = vrot.lane.b32.xlu0 %v252, 1
    %v579 = vpop.permute.xlu0 %578
    %580 = vrot.lane.b32.xlu0 %v256, 1
    %v581 = vpop.permute.xlu0 %580
    %582 = vrot.lane.b32.xlu0 %v260, 1
    %v583 = vpop.permute.xlu0 %582
    %584 = vrot.lane.b32.xlu0 %v264, 1
    %v585 = vpop.permute.xlu0 %584
    %vm586 = vcmp.lt.s32.totalorder %v298, 1
    %v587 = vsel %vm586, %v571, %v579
    %v588 = vsel %vm586, %v573, %v581
    %v589 = vsel %vm586, %v575, %v583
    %v590 = vsel %vm586, %v577, %v585
    %v591 = vsel %vm586, %v563, %v571
    %v592 = vsel %vm586, %v565, %v573
    %v593 = vsel %vm586, %v567, %v575
    %v594 = vsel %vm586, %v569, %v577
    %v595 = vsel %vm586, %v555, %v563
    %v596 = vsel %vm586, %v557, %v565
    %v597 = vsel %vm586, %v559, %v567
    %v598 = vsel %vm586, %v561, %v569
    %v599 = vsel %vm586, %v579, %v555
    %v600 = vsel %vm586, %v581, %v557
    %v601 = vsel %vm586, %v583, %v559
    %v602 = vsel %vm586, %v585, %v561
    %s603 = scalar_lea.vmem %s4, 3
    %v604 = vld [vmem:[%s603] ss:$8 sm:$0xf]
    %v606 = vlaneseq
    %v607 = vshrl.u32 %v606, 7
    %v608 = vsub.s32 0, %v607
    %v609 = vrot.slane %v604, %v608
    %v610 = vlaneseq
    %v611 = vshrl.u32 %v610, 7
    %v612 = vsub.s32 1, %v611
    %v613 = vrot.slane %v604, %v612
    %v614 = vlaneseq
    %v615 = vshrl.u32 %v614, 7
    %v616 = vsub.s32 2, %v615
    %v617 = vrot.slane %v604, %v616
    %v618 = vlaneseq
    %v619 = vshrl.u32 %v618, 7
    %v620 = vsub.s32 3, %v619
    %v621 = vrot.slane %v604, %v620
    %v626 = vmul.f32 %v599, %v609
    %v627 = vmul.f32 %v595, %v613
    %v628 = vmul.f32 %v591, %v617
    %v629 = vmul.f32 %v587, %v621
    %v630 = vmul.f32 %v600, %v609
    %v631 = vmul.f32 %v596, %v613
    %v632 = vmul.f32 %v592, %v617
    %v633 = vmul.f32 %v588, %v621
    %v634 = vmul.f32 %v601, %v609
    %v635 = vmul.f32 %v597, %v613
    %v636 = vmul.f32 %v593, %v617
    %v637 = vmul.f32 %v589, %v621
    %v638 = vmul.f32 %v602, %v609
    %v639 = vmul.f32 %v598, %v613
    %v640 = vmul.f32 %v594, %v617
    %v641 = vmul.f32 %v590, %v621
    %v642 = vpack.c.bf16 %v630, %v626
    %v643 = vpack.c.bf16 %v631, %v627
    %v644 = vpack.c.bf16 %v632, %v628
    %v645 = vpack.c.bf16 %v633, %v629
    %v646 = vpack.c.bf16 %v638, %v634
    %v647 = vpack.c.bf16 %v639, %v635
    %v648 = vpack.c.bf16 %v640, %v636
    %v649 = vpack.c.bf16 %v641, %v637
    %s650 = scalar_lea.vmem %s4, 4
    %v651 = vld [vmem:[%s650] ss:$8 sm:$0xf]
    %v653 = vlaneseq
    %v654 = vshrl.u32 %v653, 7
    %v655 = vsub.s32 0, %v654
    %v656 = vrot.slane %v651, %v655
    %v657 = vlaneseq
    %v658 = vshrl.u32 %v657, 7
    %v659 = vsub.s32 1, %v658
    %v660 = vrot.slane %v651, %v659
    %v661 = vlaneseq
    %v662 = vshrl.u32 %v661, 7
    %v663 = vsub.s32 2, %v662
    %v664 = vrot.slane %v651, %v663
    %v665 = vlaneseq
    %v666 = vshrl.u32 %v665, 7
    %v667 = vsub.s32 3, %v666
    %v668 = vrot.slane %v651, %v667
    %v673 = vmul.f32 %v249, %v656
    %v674 = vmul.f32 %v250, %v660
    %v675 = vmul.f32 %v251, %v664
    %v676 = vmul.f32 %v252, %v668
    %v677 = vmul.f32 %v253, %v656
    %v678 = vmul.f32 %v254, %v660
    %v679 = vmul.f32 %v255, %v664
    %v680 = vmul.f32 %v256, %v668
    %v681 = vmul.f32 %v257, %v656
    %v682 = vmul.f32 %v258, %v660
    %v683 = vmul.f32 %v259, %v664
    %v684 = vmul.f32 %v260, %v668
    %v685 = vmul.f32 %v261, %v656
    %v686 = vmul.f32 %v262, %v660
    %v687 = vmul.f32 %v263, %v664
    %v688 = vmul.f32 %v264, %v668
    %v689 = vpack.c.bf16 %v677, %v673
    %v690 = vpack.c.bf16 %v678, %v674
    %v691 = vpack.c.bf16 %v679, %v675
    %v692 = vpack.c.bf16 %v680, %v676
    %v693 = vpack.c.bf16 %v685, %v681
    %v694 = vpack.c.bf16 %v686, %v682
    %v695 = vpack.c.bf16 %v687, %v683
    %v696 = vpack.c.bf16 %v688, %v684
    %697 = vrot.lane.b32.xlu0 %v249, 127
    %v698 = vpop.permute.xlu0 %697
    %699 = vrot.lane.b32.xlu0 %v253, 127
    %v700 = vpop.permute.xlu0 %699
    %701 = vrot.lane.b32.xlu0 %v257, 127
    %v702 = vpop.permute.xlu0 %701
    %703 = vrot.lane.b32.xlu0 %v261, 127
    %v704 = vpop.permute.xlu0 %703
    %705 = vrot.lane.b32.xlu0 %v250, 127
    %v706 = vpop.permute.xlu0 %705
    %707 = vrot.lane.b32.xlu0 %v254, 127
    %v708 = vpop.permute.xlu0 %707
    %709 = vrot.lane.b32.xlu0 %v258, 127
    %v710 = vpop.permute.xlu0 %709
    %711 = vrot.lane.b32.xlu0 %v262, 127
    %v712 = vpop.permute.xlu0 %711
    %713 = vrot.lane.b32.xlu0 %v251, 127
    %v714 = vpop.permute.xlu0 %713
    %715 = vrot.lane.b32.xlu0 %v255, 127
    %v716 = vpop.permute.xlu0 %715
    %717 = vrot.lane.b32.xlu0 %v259, 127
    %v718 = vpop.permute.xlu0 %717
    %719 = vrot.lane.b32.xlu0 %v263, 127
    %v720 = vpop.permute.xlu0 %719
    %721 = vrot.lane.b32.xlu0 %v252, 127
    %v722 = vpop.permute.xlu0 %721
    %723 = vrot.lane.b32.xlu0 %v256, 127
    %v724 = vpop.permute.xlu0 %723
    %725 = vrot.lane.b32.xlu0 %v260, 127
    %v726 = vpop.permute.xlu0 %725
    %727 = vrot.lane.b32.xlu0 %v264, 127
    %v728 = vpop.permute.xlu0 %727
    %vm729 = vcmp.lt.s32.totalorder %v298, 127
    %v730 = vsel %vm729, %v714, %v722
    %v731 = vsel %vm729, %v716, %v724
    %v732 = vsel %vm729, %v718, %v726
    %v733 = vsel %vm729, %v720, %v728
    %v734 = vsel %vm729, %v706, %v714
    %v735 = vsel %vm729, %v708, %v716
    %v736 = vsel %vm729, %v710, %v718
    %v737 = vsel %vm729, %v712, %v720
    %v738 = vsel %vm729, %v698, %v706
    %v739 = vsel %vm729, %v700, %v708
    %v740 = vsel %vm729, %v702, %v710
    %v741 = vsel %vm729, %v704, %v712
    %v742 = vsel %vm729, %v722, %v698
    %v743 = vsel %vm729, %v724, %v700
    %v744 = vsel %vm729, %v726, %v702
    %v745 = vsel %vm729, %v728, %v704
    %s746 = scalar_lea.vmem %s4, 5
    %v747 = vld [vmem:[%s746] ss:$8 sm:$0xf]
    %v749 = vlaneseq
    %v750 = vshrl.u32 %v749, 7
    %v751 = vsub.s32 0, %v750
    %v752 = vrot.slane %v747, %v751
    %v753 = vlaneseq
    %v754 = vshrl.u32 %v753, 7
    %v755 = vsub.s32 1, %v754
    %v756 = vrot.slane %v747, %v755
    %v757 = vlaneseq
    %v758 = vshrl.u32 %v757, 7
    %v759 = vsub.s32 2, %v758
    %v760 = vrot.slane %v747, %v759
    %v761 = vlaneseq
    %v762 = vshrl.u32 %v761, 7
    %v763 = vsub.s32 3, %v762
    %v764 = vrot.slane %v747, %v763
    %v769 = vmul.f32 %v738, %v752
    %v770 = vmul.f32 %v734, %v756
    %v771 = vmul.f32 %v730, %v760
    %v772 = vmul.f32 %v742, %v764
    %v773 = vmul.f32 %v739, %v752
    %v774 = vmul.f32 %v735, %v756
    %v775 = vmul.f32 %v731, %v760
    %v776 = vmul.f32 %v743, %v764
    %v777 = vmul.f32 %v740, %v752
    %v778 = vmul.f32 %v736, %v756
    %v779 = vmul.f32 %v732, %v760
    %v780 = vmul.f32 %v744, %v764
    %v781 = vmul.f32 %v741, %v752
    %v782 = vmul.f32 %v737, %v756
    %v783 = vmul.f32 %v733, %v760
    %v784 = vmul.f32 %v745, %v764
    %v785 = vpack.c.bf16 %v773, %v769
    %v786 = vpack.c.bf16 %v774, %v770
    %v787 = vpack.c.bf16 %v775, %v771
    %v788 = vpack.c.bf16 %v776, %v772
    %v789 = vpack.c.bf16 %v781, %v777
    %v790 = vpack.c.bf16 %v782, %v778
    %v791 = vpack.c.bf16 %v783, %v779
    %v792 = vpack.c.bf16 %v784, %v780
    %793 = vrot.lane.b32.xlu0 %v249, 113
    %v794 = vpop.permute.xlu0 %793
    %795 = vrot.lane.b32.xlu0 %v253, 113
    %v796 = vpop.permute.xlu0 %795
    %797 = vrot.lane.b32.xlu0 %v257, 113
    %v798 = vpop.permute.xlu0 %797
    %799 = vrot.lane.b32.xlu0 %v261, 113
    %v800 = vpop.permute.xlu0 %799
    %801 = vrot.lane.b32.xlu0 %v250, 113
    %v802 = vpop.permute.xlu0 %801
    %803 = vrot.lane.b32.xlu0 %v254, 113
    %v804 = vpop.permute.xlu0 %803
    %805 = vrot.lane.b32.xlu0 %v258, 113
    %v806 = vpop.permute.xlu0 %805
    %807 = vrot.lane.b32.xlu0 %v262, 113
    %v808 = vpop.permute.xlu0 %807
    %809 = vrot.lane.b32.xlu0 %v251, 113
    %v810 = vpop.permute.xlu0 %809
    %811 = vrot.lane.b32.xlu0 %v255, 113
    %v812 = vpop.permute.xlu0 %811
    %813 = vrot.lane.b32.xlu0 %v259, 113
    %v814 = vpop.permute.xlu0 %813
    %815 = vrot.lane.b32.xlu0 %v263, 113
    %v816 = vpop.permute.xlu0 %815
    %817 = vrot.lane.b32.xlu0 %v252, 113
    %v818 = vpop.permute.xlu0 %817
    %819 = vrot.lane.b32.xlu0 %v256, 113
    %v820 = vpop.permute.xlu0 %819
    %821 = vrot.lane.b32.xlu0 %v260, 113
    %v822 = vpop.permute.xlu0 %821
    %823 = vrot.lane.b32.xlu0 %v264, 113
    %v824 = vpop.permute.xlu0 %823
    %vm825 = vcmp.lt.s32.totalorder %v298, 113
    %v826 = vsel %vm825, %v810, %v818
    %v827 = vsel %vm825, %v812, %v820
    %v828 = vsel %vm825, %v814, %v822
    %v829 = vsel %vm825, %v816, %v824
    %v830 = vsel %vm825, %v802, %v810
    %v831 = vsel %vm825, %v804, %v812
    %v832 = vsel %vm825, %v806, %v814
    %v833 = vsel %vm825, %v808, %v816
    %v834 = vsel %vm825, %v794, %v802
    %v835 = vsel %vm825, %v796, %v804
    %v836 = vsel %vm825, %v798, %v806
    %v837 = vsel %vm825, %v800, %v808
    %v838 = vsel %vm825, %v818, %v794
    %v839 = vsel %vm825, %v820, %v796
    %v840 = vsel %vm825, %v822, %v798
    %v841 = vsel %vm825, %v824, %v800
    %s842 = scalar_lea.vmem %s4, 6
    %v843 = vld [vmem:[%s842] ss:$8 sm:$0xf]
    %v845 = vlaneseq
    %v846 = vshrl.u32 %v845, 7
    %v847 = vsub.s32 0, %v846
    %v848 = vrot.slane %v843, %v847
    %v849 = vlaneseq
    %v850 = vshrl.u32 %v849, 7
    %v851 = vsub.s32 1, %v850
    %v852 = vrot.slane %v843, %v851
    %v853 = vlaneseq
    %v854 = vshrl.u32 %v853, 7
    %v855 = vsub.s32 2, %v854
    %v856 = vrot.slane %v843, %v855
    %v857 = vlaneseq
    %v858 = vshrl.u32 %v857, 7
    %v859 = vsub.s32 3, %v858
    %v860 = vrot.slane %v843, %v859
    %v865 = vmul.f32 %v834, %v848
    %v866 = vmul.f32 %v830, %v852
    %v867 = vmul.f32 %v826, %v856
    %v868 = vmul.f32 %v838, %v860
    %v869 = vmul.f32 %v835, %v848
    %v870 = vmul.f32 %v831, %v852
    %v871 = vmul.f32 %v827, %v856
    %v872 = vmul.f32 %v839, %v860
    %v873 = vmul.f32 %v836, %v848
    %v874 = vmul.f32 %v832, %v852
    %v875 = vmul.f32 %v828, %v856
    %v876 = vmul.f32 %v840, %v860
    %v877 = vmul.f32 %v837, %v848
    %v878 = vmul.f32 %v833, %v852
    %v879 = vmul.f32 %v829, %v856
    %v880 = vmul.f32 %v841, %v860
    %v881 = vpack.c.bf16 %v869, %v865
    %v882 = vpack.c.bf16 %v870, %v866
    %v883 = vpack.c.bf16 %v871, %v867
    %v884 = vpack.c.bf16 %v872, %v868
    %v885 = vpack.c.bf16 %v877, %v873
    %v886 = vpack.c.bf16 %v878, %v874
    %v887 = vpack.c.bf16 %v879, %v875
    %v888 = vpack.c.bf16 %v880, %v876
    %889 = vrot.lane.b32.xlu0 %v249, 112
    %v890 = vpop.permute.xlu0 %889
    %891 = vrot.lane.b32.xlu0 %v253, 112
    %v892 = vpop.permute.xlu0 %891
    %893 = vrot.lane.b32.xlu0 %v257, 112
    %v894 = vpop.permute.xlu0 %893
    %895 = vrot.lane.b32.xlu0 %v261, 112
    %v896 = vpop.permute.xlu0 %895
    %897 = vrot.lane.b32.xlu0 %v250, 112
    %v898 = vpop.permute.xlu0 %897
    %899 = vrot.lane.b32.xlu0 %v254, 112
    %v900 = vpop.permute.xlu0 %899
    %901 = vrot.lane.b32.xlu0 %v258, 112
    %v902 = vpop.permute.xlu0 %901
    %903 = vrot.lane.b32.xlu0 %v262, 112
    %v904 = vpop.permute.xlu0 %903
    %905 = vrot.lane.b32.xlu0 %v251, 112
    %v906 = vpop.permute.xlu0 %905
    %907 = vrot.lane.b32.xlu0 %v255, 112
    %v908 = vpop.permute.xlu0 %907
    %909 = vrot.lane.b32.xlu0 %v259, 112
    %v910 = vpop.permute.xlu0 %909
    %911 = vrot.lane.b32.xlu0 %v263, 112
    %v912 = vpop.permute.xlu0 %911
    %913 = vrot.lane.b32.xlu0 %v252, 112
    %v914 = vpop.permute.xlu0 %913
    %915 = vrot.lane.b32.xlu0 %v256, 112
    %v916 = vpop.permute.xlu0 %915
    %917 = vrot.lane.b32.xlu0 %v260, 112
    %v918 = vpop.permute.xlu0 %917
    %919 = vrot.lane.b32.xlu0 %v264, 112
    %v920 = vpop.permute.xlu0 %919
    %vm921 = vcmp.lt.s32.totalorder %v298, 112
    %v922 = vsel %vm921, %v906, %v914
    %v923 = vsel %vm921, %v908, %v916
    %v924 = vsel %vm921, %v910, %v918
    %v925 = vsel %vm921, %v912, %v920
    %v926 = vsel %vm921, %v898, %v906
    %v927 = vsel %vm921, %v900, %v908
    %v928 = vsel %vm921, %v902, %v910
    %v929 = vsel %vm921, %v904, %v912
    %v930 = vsel %vm921, %v890, %v898
    %v931 = vsel %vm921, %v892, %v900
    %v932 = vsel %vm921, %v894, %v902
    %v933 = vsel %vm921, %v896, %v904
    %v934 = vsel %vm921, %v914, %v890
    %v935 = vsel %vm921, %v916, %v892
    %v936 = vsel %vm921, %v918, %v894
    %v937 = vsel %vm921, %v920, %v896
    %s938 = scalar_lea.vmem %s4, 7
    %v939 = vld [vmem:[%s938] ss:$8 sm:$0xf]
    %v941 = vlaneseq
    %v942 = vshrl.u32 %v941, 7
    %v943 = vsub.s32 0, %v942
    %v944 = vrot.slane %v939, %v943
    %v945 = vlaneseq
    %v946 = vshrl.u32 %v945, 7
    %v947 = vsub.s32 1, %v946
    %v948 = vrot.slane %v939, %v947
    %v949 = vlaneseq
    %v950 = vshrl.u32 %v949, 7
    %v951 = vsub.s32 2, %v950
    %v952 = vrot.slane %v939, %v951
    %v953 = vlaneseq
    %v954 = vshrl.u32 %v953, 7
    %v955 = vsub.s32 3, %v954
    %v956 = vrot.slane %v939, %v955
    %v961 = vmul.f32 %v930, %v944
    %v962 = vmul.f32 %v926, %v948
    %v963 = vmul.f32 %v922, %v952
    %v964 = vmul.f32 %v934, %v956
    %v965 = vmul.f32 %v931, %v944
    %v966 = vmul.f32 %v927, %v948
    %v967 = vmul.f32 %v923, %v952
    %v968 = vmul.f32 %v935, %v956
    %v969 = vmul.f32 %v932, %v944
    %v970 = vmul.f32 %v928, %v948
    %v971 = vmul.f32 %v924, %v952
    %v972 = vmul.f32 %v936, %v956
    %v973 = vmul.f32 %v933, %v944
    %v974 = vmul.f32 %v929, %v948
    %v975 = vmul.f32 %v925, %v952
    %v976 = vmul.f32 %v937, %v956
    %v977 = vpack.c.bf16 %v965, %v961
    %v978 = vpack.c.bf16 %v966, %v962
    %v979 = vpack.c.bf16 %v967, %v963
    %v980 = vpack.c.bf16 %v968, %v964
    %v981 = vpack.c.bf16 %v973, %v969
    %v982 = vpack.c.bf16 %v974, %v970
    %v983 = vpack.c.bf16 %v975, %v971
    %v984 = vpack.c.bf16 %v976, %v972
    %985 = vrot.lane.b32.xlu0 %v249, 111
    %v986 = vpop.permute.xlu0 %985
    %987 = vrot.lane.b32.xlu0 %v253, 111
    %v988 = vpop.permute.xlu0 %987
    %989 = vrot.lane.b32.xlu0 %v257, 111
    %v990 = vpop.permute.xlu0 %989
    %991 = vrot.lane.b32.xlu0 %v261, 111
    %v992 = vpop.permute.xlu0 %991
    %993 = vrot.lane.b32.xlu0 %v250, 111
    %v994 = vpop.permute.xlu0 %993
    %995 = vrot.lane.b32.xlu0 %v254, 111
    %v996 = vpop.permute.xlu0 %995
    %997 = vrot.lane.b32.xlu0 %v258, 111
    %v998 = vpop.permute.xlu0 %997
    %999 = vrot.lane.b32.xlu0 %v262, 111
    %v1000 = vpop.permute.xlu0 %999
    %1001 = vrot.lane.b32.xlu0 %v251, 111
    %v1002 = vpop.permute.xlu0 %1001
    %1003 = vrot.lane.b32.xlu0 %v255, 111
    %v1004 = vpop.permute.xlu0 %1003
    %1005 = vrot.lane.b32.xlu0 %v259, 111
    %v1006 = vpop.permute.xlu0 %1005
    %1007 = vrot.lane.b32.xlu0 %v263, 111
    %v1008 = vpop.permute.xlu0 %1007
    %1009 = vrot.lane.b32.xlu0 %v252, 111
    %v1010 = vpop.permute.xlu0 %1009
    %1011 = vrot.lane.b32.xlu0 %v256, 111
    %v1012 = vpop.permute.xlu0 %1011
    %1013 = vrot.lane.b32.xlu0 %v260, 111
    %v1014 = vpop.permute.xlu0 %1013
    %1015 = vrot.lane.b32.xlu0 %v264, 111
    %v1016 = vpop.permute.xlu0 %1015
    %vm1017 = vcmp.lt.s32.totalorder %v298, 111
    %v1018 = vsel %vm1017, %v1002, %v1010
    %v1019 = vsel %vm1017, %v1004, %v1012
    %v1020 = vsel %vm1017, %v1006, %v1014
    %v1021 = vsel %vm1017, %v1008, %v1016
    %v1022 = vsel %vm1017, %v994, %v1002
    %v1023 = vsel %vm1017, %v996, %v1004
    %v1024 = vsel %vm1017, %v998, %v1006
    %v1025 = vsel %vm1017, %v1000, %v1008
    %v1026 = vsel %vm1017, %v986, %v994
    %v1027 = vsel %vm1017, %v988, %v996
    %v1028 = vsel %vm1017, %v990, %v998
    %v1029 = vsel %vm1017, %v992, %v1000
    %v1030 = vsel %vm1017, %v1010, %v986
    %v1031 = vsel %vm1017, %v1012, %v988
    %v1032 = vsel %vm1017, %v1014, %v990
    %v1033 = vsel %vm1017, %v1016, %v992
    %s1034 = scalar_lea.vmem %s4, 32
    %v1035 = vld [vmem:[%s1034] ss:$8 sm:$0xf]
    %v1037 = vlaneseq
    %v1038 = vshrl.u32 %v1037, 7
    %v1039 = vsub.s32 0, %v1038
    %v1040 = vrot.slane %v1035, %v1039
    %v1041 = vlaneseq
    %v1042 = vshrl.u32 %v1041, 7
    %v1043 = vsub.s32 1, %v1042
    %v1044 = vrot.slane %v1035, %v1043
    %v1045 = vlaneseq
    %v1046 = vshrl.u32 %v1045, 7
    %v1047 = vsub.s32 2, %v1046
    %v1048 = vrot.slane %v1035, %v1047
    %v1049 = vlaneseq
    %v1050 = vshrl.u32 %v1049, 7
    %v1051 = vsub.s32 3, %v1050
    %v1052 = vrot.slane %v1035, %v1051
    %v1057 = vmul.f32 %v1026, %v1040
    %v1058 = vmul.f32 %v1022, %v1044
    %v1059 = vmul.f32 %v1018, %v1048
    %v1060 = vmul.f32 %v1030, %v1052
    %v1061 = vmul.f32 %v1027, %v1040
    %v1062 = vmul.f32 %v1023, %v1044
    %v1063 = vmul.f32 %v1019, %v1048
    %v1064 = vmul.f32 %v1031, %v1052
    %v1065 = vmul.f32 %v1028, %v1040
    %v1066 = vmul.f32 %v1024, %v1044
    %v1067 = vmul.f32 %v1020, %v1048
    %v1068 = vmul.f32 %v1032, %v1052
    %v1069 = vmul.f32 %v1029, %v1040
    %v1070 = vmul.f32 %v1025, %v1044
    %v1071 = vmul.f32 %v1021, %v1048
    %v1072 = vmul.f32 %v1033, %v1052
    %v1073 = vpack.c.bf16 %v1061, %v1057
    %v1074 = vpack.c.bf16 %v1062, %v1058
    %v1075 = vpack.c.bf16 %v1063, %v1059
    %v1076 = vpack.c.bf16 %v1064, %v1060
    %v1077 = vpack.c.bf16 %v1069, %v1065
    %v1078 = vpack.c.bf16 %v1070, %v1066
    %v1079 = vpack.c.bf16 %v1071, %v1067
    %v1080 = vpack.c.bf16 %v1072, %v1068
    %v1081 = vld [vmem:[%s2] sm:$0xff]
    %v1082 = vld [vmem:[%s2 + $0x8] sm:$0xf]
    %v1083 = vld [vmem:[%s2 + $0xc] sm:$0xff]
    %v1084 = vld [vmem:[%s2 + $0x14] sm:$0xf]
    %v1085 = vld [vmem:[%s2 + $0x18] sm:$0xff]
    %v1086 = vld [vmem:[%s2 + $0x20] sm:$0xf]
    %v1087 = vld [vmem:[%s2 + $0x24] sm:$0xff]
    %v1088 = vld [vmem:[%s2 + $0x2c] sm:$0xf]
    %s1089 = scalar_lea.vmem %s3, 32
    %v1090 = vld [vmem:[%s1089] sm:$0xff]
    %v1091 = vld [vmem:[%s1089 + $0x8] sm:$0xff]
    %v1092 = vld [vmem:[%s1089 + $0x10] sm:$0xff]
    %v1093 = vld [vmem:[%s1089 + $0x18] sm:$0xff]
    %1095 = vset.pattern.permute.xlu0 0
    %1096 = vperm.xlu0 %1095, %v1090
    %v1097 = vpop.permute.xlu0 %1096
    %1100 = vset.pattern.permute.xlu0 0
    %1101 = vperm.xlu0 %1100, %v1091
    %v1102 = vpop.permute.xlu0 %1101
    %1105 = vset.pattern.permute.xlu0 0
    %1106 = vperm.xlu0 %1105, %v1092
    %v1107 = vpop.permute.xlu0 %1106
    %1110 = vset.pattern.permute.xlu0 0
    %1111 = vperm.xlu0 %1110, %v1093
    %v1112 = vpop.permute.xlu0 %1111
    %v1122 = vunpack.c.l.b16 %v1081
    %v1123 = vunpack.c.h.b16 %v1081
    %v1124 = vunpack.c.l.b16 %v1082
    %v1125 = vunpack.c.l.b16 %v1083
    %v1126 = vunpack.c.h.b16 %v1083
    %v1127 = vunpack.c.l.b16 %v1084
    %v1128 = vunpack.c.l.b16 %v1085
    %v1129 = vunpack.c.h.b16 %v1085
    %v1130 = vunpack.c.l.b16 %v1086
    %v1131 = vunpack.c.l.b16 %v1087
    %v1132 = vunpack.c.h.b16 %v1087
    %v1133 = vunpack.c.l.b16 %v1088
    %v1134 = vpack.c.b16 %v1125, %v1122
    %v1135 = vpack.c.b16 %v1126, %v1123
    %v1136 = vpack.c.b16 %v1127, %v1124
    %v1137 = vpack.c.b16 %v1131, %v1128
    %v1138 = vpack.c.b16 %v1132, %v1129
    %v1139 = vpack.c.b16 %v1133, %v1130
    %vm1144 = vcmask 261120
    %v1146 = vsel %vm1144, %v1136, 0
    %v1149 = vsel %vm1144, %v1139, 0
    %1151 = vmatprep.subr.bf16.mxu0 %v355
    %1152 = vmatpush1.bf16.msra.mxu0 %v354
    %1153 = vmatprep.subr.bf16.mxu0 %v359
    %1154 = vmatpush1.bf16.msra.mxu0 %v358
    %1155 = vmatprep.subr.bf16.mxu0 %v451
    %1156 = vmatpush1.bf16.msra.mxu0 %v450
    %1157 = vmatprep.subr.bf16.mxu0 %v455
    %1158 = vmatpush1.bf16.msra.mxu0 %v454
    %1159 = vmatprep.subr.bf16.mxu0 %v547
    %1160 = vmatpush1.bf16.msra.mxu0 %v546
    %1161 = vmatprep.subr.bf16.mxu0 %v551
    %1162 = vmatpush1.bf16.msra.mxu0 %v550
    %1163 = vmatprep.subr.bf16.mxu0 %v643
    %1164 = vmatpush1.bf16.msra.mxu0 %v642
    %1165 = vmatprep.subr.bf16.mxu0 %v647
    %1166 = vmatpush1.bf16.msra.mxu0 %v646
    %1167 = vmatprep.subr.bf16.mxu0 %v690
    %1168 = vmatpush1.bf16.msra.mxu0 %v689
    %1169 = vmatprep.subr.bf16.mxu0 %v694
    %1170 = vmatpush1.bf16.msra.mxu0 %v693
    %1171 = vmatprep.subr.bf16.mxu0 %v786
    %1172 = vmatpush1.bf16.msra.mxu0 %v785
    %1173 = vmatprep.subr.bf16.mxu0 %v790
    %1174 = vmatpush1.bf16.msra.mxu0 %v789
    %1175 = vmatprep.subr.bf16.mxu0 %v882
    %1176 = vmatpush1.bf16.msra.mxu0 %v881
    %1177 = vmatprep.subr.bf16.mxu0 %v886
    %1178 = vmatpush1.bf16.msra.mxu0 %v885
    %1179 = vmatprep.subr.bf16.mxu0 %v978
    %1180 = vmatpush1.bf16.msra.mxu0 %v977
    %1181 = vmatprep.subr.bf16.mxu0 %v982
    %1182 = vmatpush1.bf16.msra.mxu0 %v981
    %1183 = vmatprep.mubr.bf16.mxu0 %v1135
    %1184 = vmatmul.mubr.bf16.gmra.mrb[0].mxu0 %v1134
    %v1185 = vpop.f32.mrb[0].mxu0
    %v1186 = vadd.f32 %v1097, %v1185
    %v1187 = vpop.f32.mrb[0].mxu0
    %v1188 = vadd.f32 %v1097, %v1187
    %v1189 = vpop.f32.mrb[0].mxu0
    %v1190 = vadd.f32 %v1102, %v1189
    %v1191 = vpop.f32.mrb[0].mxu0
    %v1192 = vadd.f32 %v1102, %v1191
    %1193 = vmatprep.mubr.bf16.mxu0 %v1138
    %1194 = vmatmul.mubr.bf16.gmra.mrb[0].mxu0 %v1137
    %v1195 = vpop.f32.mrb[0].mxu0
    %v1196 = vadd.f32 %v1107, %v1195
    %v1197 = vpop.f32.mrb[0].mxu0
    %v1198 = vadd.f32 %v1107, %v1197
    %v1199 = vpop.f32.mrb[0].mxu0
    %v1200 = vadd.f32 %v1112, %v1199
    %v1201 = vpop.f32.mrb[0].mxu0
    %v1202 = vadd.f32 %v1112, %v1201
    %1203 = vdwg.mxu0
    %1204 = vmatprep.subr.bf16.mxu0 %v1074
    %1205 = vmatpush1.bf16.msra.mxu0 %v1073
    %1206 = vmatprep.subr.bf16.mxu0 %v1078
    %1207 = vmatpush1.bf16.msra.mxu0 %v1077
    %1208 = vmatprep.subr.bf16.mxu0 0
    %1209 = vmatpush1.bf16.msra.mxu0 0
    %1210 = vmatprep.subr.bf16.mxu0 0
    %1211 = vmatpush1.bf16.msra.mxu0 0
    %1212 = vmatprep.subr.bf16.mxu0 0
    %1213 = vmatpush1.bf16.msra.mxu0 0
    %1214 = vmatprep.subr.bf16.mxu0 0
    %1215 = vmatpush1.bf16.msra.mxu0 0
    %1216 = vmatprep.subr.bf16.mxu0 0
    %1217 = vmatpush1.bf16.msra.mxu0 0
    %1218 = vmatprep.subr.bf16.mxu0 0
    %1219 = vmatpush1.bf16.msra.mxu0 0
    %1220 = vmatprep.subr.bf16.mxu0 0
    %1221 = vmatpush1.bf16.msra.mxu0 0
    %1222 = vmatprep.subr.bf16.mxu0 0
    %1223 = vmatpush1.bf16.msra.mxu0 0
    %1224 = vmatprep.subr.bf16.mxu0 0
    %1225 = vmatpush1.bf16.msra.mxu0 0
    %1226 = vmatprep.subr.bf16.mxu0 0
    %1227 = vmatpush1.bf16.msra.mxu0 0
    %1228 = vmatprep.subr.bf16.mxu0 0
    %1229 = vmatpush1.bf16.msra.mxu0 0
    %1230 = vmatprep.subr.bf16.mxu0 0
    %1231 = vmatpush1.bf16.msra.mxu0 0
    %1232 = vmatprep.subr.bf16.mxu0 0
    %1233 = vmatpush1.bf16.msra.mxu0 0
    %1234 = vmatprep.subr.bf16.mxu0 0
    %1235 = vmatpush1.bf16.msra.mxu0 0
    %1236 = vmatprep.mubr.bf16.mxu0 0
    %1237 = vmatmul.mubr.bf16.gmra.mrb[0].mxu0 %v1146
    %v1238 = vpop.f32.mrb[0].mxu0
    %v1239 = vadd.f32 %v1186, %v1238
    %v1240 = vpop.f32.mrb[0].mxu0
    %v1241 = vadd.f32 %v1188, %v1240
    %v1242 = vpop.f32.mrb[0].mxu0
    %v1243 = vadd.f32 %v1190, %v1242
    %v1244 = vpop.f32.mrb[0].mxu0
    %v1245 = vadd.f32 %v1192, %v1244
    %1246 = vmatprep.mubr.bf16.mxu0 0
    %1247 = vmatmul.mubr.bf16.gmra.mrb[0].mxu0 %v1149
    %v1248 = vpop.f32.mrb[0].mxu0
    %v1249 = vadd.f32 %v1196, %v1248
    %v1250 = vpop.f32.mrb[0].mxu0
    %v1251 = vadd.f32 %v1198, %v1250
    %v1252 = vpop.f32.mrb[0].mxu0
    %v1253 = vadd.f32 %v1200, %v1252
    %v1254 = vpop.f32.mrb[0].mxu0
    %v1255 = vadd.f32 %v1202, %v1254
    %1256 = vdwg.mxu0
    %1257 = vmatprep.subr.bf16.mxu0 %v357
    %1258 = vmatpush1.bf16.msra.mxu0 %v356
    %1259 = vmatprep.subr.bf16.mxu0 %v361
    %1260 = vmatpush1.bf16.msra.mxu0 %v360
    %1261 = vmatprep.subr.bf16.mxu0 %v453
    %1262 = vmatpush1.bf16.msra.mxu0 %v452
    %1263 = vmatprep.subr.bf16.mxu0 %v457
    %1264 = vmatpush1.bf16.msra.mxu0 %v456
    %1265 = vmatprep.subr.bf16.mxu0 %v549
    %1266 = vmatpush1.bf16.msra.mxu0 %v548
    %1267 = vmatprep.subr.bf16.mxu0 %v553
    %1268 = vmatpush1.bf16.msra.mxu0 %v552
    %1269 = vmatprep.subr.bf16.mxu0 %v645
    %1270 = vmatpush1.bf16.msra.mxu0 %v644
    %1271 = vmatprep.subr.bf16.mxu0 %v649
    %1272 = vmatpush1.bf16.msra.mxu0 %v648
    %1273 = vmatprep.subr.bf16.mxu0 %v692
    %1274 = vmatpush1.bf16.msra.mxu0 %v691
    %1275 = vmatprep.subr.bf16.mxu0 %v696
    %1276 = vmatpush1.bf16.msra.mxu0 %v695
    %1277 = vmatprep.subr.bf16.mxu0 %v788
    %1278 = vmatpush1.bf16.msra.mxu0 %v787
    %1279 = vmatprep.subr.bf16.mxu0 %v792
    %1280 = vmatpush1.bf16.msra.mxu0 %v791
    %1281 = vmatprep.subr.bf16.mxu0 %v884
    %1282 = vmatpush1.bf16.msra.mxu0 %v883
    %1283 = vmatprep.subr.bf16.mxu0 %v888
    %1284 = vmatpush1.bf16.msra.mxu0 %v887
    %1285 = vmatprep.subr.bf16.mxu0 %v980
    %1286 = vmatpush1.bf16.msra.mxu0 %v979
    %1287 = vmatprep.subr.bf16.mxu0 %v984
    %1288 = vmatpush1.bf16.msra.mxu0 %v983
    %1289 = vmatprep.mubr.bf16.mxu0 %v1135
    %1290 = vmatmul.mubr.bf16.gmra.mrb[0].mxu0 %v1134
    %v1291 = vpop.f32.mrb[0].mxu0
    %v1292 = vadd.f32 %v1097, %v1291
    %v1293 = vpop.f32.mrb[0].mxu0
    %v1294 = vadd.f32 %v1097, %v1293
    %v1295 = vpop.f32.mrb[0].mxu0
    %v1296 = vadd.f32 %v1102, %v1295
    %v1297 = vpop.f32.mrb[0].mxu0
    %v1298 = vadd.f32 %v1102, %v1297
    %1299 = vmatprep.mubr.bf16.mxu0 %v1138
    %1300 = vmatmul.mubr.bf16.gmra.mrb[0].mxu0 %v1137
    %v1301 = vpop.f32.mrb[0].mxu0
    %v1302 = vadd.f32 %v1107, %v1301
    %v1303 = vpop.f32.mrb[0].mxu0
    %v1304 = vadd.f32 %v1107, %v1303
    %v1305 = vpop.f32.mrb[0].mxu0
    %v1306 = vadd.f32 %v1112, %v1305
    %v1307 = vpop.f32.mrb[0].mxu0
    %v1308 = vadd.f32 %v1112, %v1307
    %1309 = vdwg.mxu0
    %1310 = vmatprep.subr.bf16.mxu0 %v1076
    %1311 = vmatpush1.bf16.msra.mxu0 %v1075
    %1312 = vmatprep.subr.bf16.mxu0 %v1080
    %1313 = vmatpush1.bf16.msra.mxu0 %v1079
    %1314 = vmatprep.subr.bf16.mxu0 0
    %1315 = vmatpush1.bf16.msra.mxu0 0
    %1316 = vmatprep.subr.bf16.mxu0 0
    %1317 = vmatpush1.bf16.msra.mxu0 0
    %1318 = vmatprep.subr.bf16.mxu0 0
    %1319 = vmatpush1.bf16.msra.mxu0 0
    %1320 = vmatprep.subr.bf16.mxu0 0
    %1321 = vmatpush1.bf16.msra.mxu0 0
    %1322 = vmatprep.subr.bf16.mxu0 0
    %1323 = vmatpush1.bf16.msra.mxu0 0
    %1324 = vmatprep.subr.bf16.mxu0 0
    %1325 = vmatpush1.bf16.msra.mxu0 0
    %1326 = vmatprep.subr.bf16.mxu0 0
    %1327 = vmatpush1.bf16.msra.mxu0 0
    %1328 = vmatprep.subr.bf16.mxu0 0
    %1329 = vmatpush1.bf16.msra.mxu0 0
    %1330 = vmatprep.subr.bf16.mxu0 0
    %1331 = vmatpush1.bf16.msra.mxu0 0
    %1332 = vmatprep.subr.bf16.mxu0 0
    %1333 = vmatpush1.bf16.msra.mxu0 0
    %1334 = vmatprep.subr.bf16.mxu0 0
    %1335 = vmatpush1.bf16.msra.mxu0 0
    %1336 = vmatprep.subr.bf16.mxu0 0
    %1337 = vmatpush1.bf16.msra.mxu0 0
    %1338 = vmatprep.subr.bf16.mxu0 0
    %1339 = vmatpush1.bf16.msra.mxu0 0
    %1340 = vmatprep.subr.bf16.mxu0 0
    %1341 = vmatpush1.bf16.msra.mxu0 0
    %1342 = vmatprep.mubr.bf16.mxu0 0
    %1343 = vmatmul.mubr.bf16.gmra.mrb[0].mxu0 %v1146
    %v1344 = vpop.f32.mrb[0].mxu0
    %v1345 = vadd.f32 %v1292, %v1344
    %v1346 = vpop.f32.mrb[0].mxu0
    %v1347 = vadd.f32 %v1294, %v1346
    %v1348 = vpop.f32.mrb[0].mxu0
    %v1349 = vadd.f32 %v1296, %v1348
    %v1350 = vpop.f32.mrb[0].mxu0
    %v1351 = vadd.f32 %v1298, %v1350
    %1352 = vmatprep.mubr.bf16.mxu0 0
    %1353 = vmatmul.mubr.bf16.gmra.mrb[0].mxu0 %v1149
    %v1354 = vpop.f32.mrb[0].mxu0
    %v1355 = vadd.f32 %v1302, %v1354
    %v1356 = vpop.f32.mrb[0].mxu0
    %v1357 = vadd.f32 %v1304, %v1356
    %v1358 = vpop.f32.mrb[0].mxu0
    %v1359 = vadd.f32 %v1306, %v1358
    %v1360 = vpop.f32.mrb[0].mxu0
    %v1361 = vadd.f32 %v1308, %v1360
    %1362 = vdwg.mxu0
    %v1363 = vmax.f32 %v1239, 0.0
    %v1364 = vmax.f32 %v1241, 0.0
    %v1365 = vmax.f32 %v1345, 0.0
    %v1366 = vmax.f32 %v1347, 0.0
    %v1367 = vmax.f32 %v1243, 0.0
    %v1368 = vmax.f32 %v1245, 0.0
    %v1369 = vmax.f32 %v1349, 0.0
    %v1370 = vmax.f32 %v1351, 0.0
    %v1371 = vmax.f32 %v1249, 0.0
    %v1372 = vmax.f32 %v1251, 0.0
    %v1373 = vmax.f32 %v1355, 0.0
    %v1374 = vmax.f32 %v1357, 0.0
    %v1375 = vmax.f32 %v1253, 0.0
    %v1376 = vmax.f32 %v1255, 0.0
    %v1377 = vmax.f32 %v1359, 0.0
    %v1378 = vmax.f32 %v1361, 0.0
    %1379 = vrot.lane.b32.xlu0 %v1363, 34
    %v1380 = vpop.permute.xlu0 %1379
    %1381 = vrot.lane.b32.xlu0 %v1367, 34
    %v1382 = vpop.permute.xlu0 %1381
    %1383 = vrot.lane.b32.xlu0 %v1371, 34
    %v1384 = vpop.permute.xlu0 %1383
    %1385 = vrot.lane.b32.xlu0 %v1375, 34
    %v1386 = vpop.permute.xlu0 %1385
    %1387 = vrot.lane.b32.xlu0 %v1364, 34
    %v1388 = vpop.permute.xlu0 %1387
    %1389 = vrot.lane.b32.xlu0 %v1368, 34
    %v1390 = vpop.permute.xlu0 %1389
    %1391 = vrot.lane.b32.xlu0 %v1372, 34
    %v1392 = vpop.permute.xlu0 %1391
    %1393 = vrot.lane.b32.xlu0 %v1376, 34
    %v1394 = vpop.permute.xlu0 %1393
    %1395 = vrot.lane.b32.xlu0 %v1365, 34
    %v1396 = vpop.permute.xlu0 %1395
    %1397 = vrot.lane.b32.xlu0 %v1369, 34
    %v1398 = vpop.permute.xlu0 %1397
    %1399 = vrot.lane.b32.xlu0 %v1373, 34
    %v1400 = vpop.permute.xlu0 %1399
    %1401 = vrot.lane.b32.xlu0 %v1377, 34
    %v1402 = vpop.permute.xlu0 %1401
    %1403 = vrot.lane.b32.xlu0 %v1366, 34
    %v1404 = vpop.permute.xlu0 %1403
    %1405 = vrot.lane.b32.xlu0 %v1370, 34
    %v1406 = vpop.permute.xlu0 %1405
    %1407 = vrot.lane.b32.xlu0 %v1374, 34
    %v1408 = vpop.permute.xlu0 %1407
    %1409 = vrot.lane.b32.xlu0 %v1378, 34
    %v1410 = vpop.permute.xlu0 %1409
    %vm1411 = vcmp.lt.s32.totalorder %v298, 34
    %v1412 = vsel %vm1411, %v1396, %v1404
    %v1413 = vsel %vm1411, %v1398, %v1406
    %v1414 = vsel %vm1411, %v1400, %v1408
    %v1415 = vsel %vm1411, %v1402, %v1410
    %v1416 = vsel %vm1411, %v1388, %v1396
    %v1417 = vsel %vm1411, %v1390, %v1398
    %v1418 = vsel %vm1411, %v1392, %v1400
    %v1419 = vsel %vm1411, %v1394, %v1402
    %v1420 = vsel %vm1411, %v1380, %v1388
    %v1421 = vsel %vm1411, %v1382, %v1390
    %v1422 = vsel %vm1411, %v1384, %v1392
    %v1423 = vsel %vm1411, %v1386, %v1394
    %v1424 = vsel %vm1411, %v1404, %v1380
    %v1425 = vsel %vm1411, %v1406, %v1382
    %v1426 = vsel %vm1411, %v1408, %v1384
    %v1427 = vsel %vm1411, %v1410, %v1386
    %s1428 = scalar_lea.vmem %s4, 64
    %v1429 = vld [vmem:[%s1428] ss:$8 sm:$0xf]
    %v1431 = vlaneseq
    %v1432 = vshrl.u32 %v1431, 7
    %v1433 = vsub.s32 0, %v1432
    %v1434 = vrot.slane %v1429, %v1433
    %v1435 = vlaneseq
    %v1436 = vshrl.u32 %v1435, 7
    %v1437 = vsub.s32 1, %v1436
    %v1438 = vrot.slane %v1429, %v1437
    %v1439 = vlaneseq
    %v1440 = vshrl.u32 %v1439, 7
    %v1441 = vsub.s32 2, %v1440
    %v1442 = vrot.slane %v1429, %v1441
    %v1443 = vlaneseq
    %v1444 = vshrl.u32 %v1443, 7
    %v1445 = vsub.s32 3, %v1444
    %v1446 = vrot.slane %v1429, %v1445
    %v1451 = vmul.f32 %v1424, %v1434
    %v1452 = vmul.f32 %v1420, %v1438
    %v1453 = vmul.f32 %v1416, %v1442
    %v1454 = vmul.f32 %v1412, %v1446
    %v1455 = vmul.f32 %v1425, %v1434
    %v1456 = vmul.f32 %v1421, %v1438
    %v1457 = vmul.f32 %v1417, %v1442
    %v1458 = vmul.f32 %v1413, %v1446
    %v1459 = vmul.f32 %v1426, %v1434
    %v1460 = vmul.f32 %v1422, %v1438
    %v1461 = vmul.f32 %v1418, %v1442
    %v1462 = vmul.f32 %v1414, %v1446
    %v1463 = vmul.f32 %v1427, %v1434
    %v1464 = vmul.f32 %v1423, %v1438
    %v1465 = vmul.f32 %v1419, %v1442
    %v1466 = vmul.f32 %v1415, %v1446
    %v1467 = vpack.c.bf16 %v1455, %v1451
    %v1468 = vpack.c.bf16 %v1456, %v1452
    %v1469 = vpack.c.bf16 %v1457, %v1453
    %v1470 = vpack.c.bf16 %v1458, %v1454
    %v1471 = vpack.c.bf16 %v1463, %v1459
    %v1472 = vpack.c.bf16 %v1464, %v1460
    %v1473 = vpack.c.bf16 %v1465, %v1461
    %v1474 = vpack.c.bf16 %v1466, %v1462
    %1475 = vrot.lane.b32.xlu0 %v1363, 32
    %v1476 = vpop.permute.xlu0 %1475
    %1477 = vrot.lane.b32.xlu0 %v1367, 32
    %v1478 = vpop.permute.xlu0 %1477
    %1479 = vrot.lane.b32.xlu0 %v1371, 32
    %v1480 = vpop.permute.xlu0 %1479
    %1481 = vrot.lane.b32.xlu0 %v1375, 32
    %v1482 = vpop.permute.xlu0 %1481
    %1483 = vrot.lane.b32.xlu0 %v1364, 32
    %v1484 = vpop.permute.xlu0 %1483
    %1485 = vrot.lane.b32.xlu0 %v1368, 32
    %v1486 = vpop.permute.xlu0 %1485
    %1487 = vrot.lane.b32.xlu0 %v1372, 32
    %v1488 = vpop.permute.xlu0 %1487
    %1489 = vrot.lane.b32.xlu0 %v1376, 32
    %v1490 = vpop.permute.xlu0 %1489
    %1491 = vrot.lane.b32.xlu0 %v1365, 32
    %v1492 = vpop.permute.xlu0 %1491
    %1493 = vrot.lane.b32.xlu0 %v1369, 32
    %v1494 = vpop.permute.xlu0 %1493
    %1495 = vrot.lane.b32.xlu0 %v1373, 32
    %v1496 = vpop.permute.xlu0 %1495
    %1497 = vrot.lane.b32.xlu0 %v1377, 32
    %v1498 = vpop.permute.xlu0 %1497
    %1499 = vrot.lane.b32.xlu0 %v1366, 32
    %v1500 = vpop.permute.xlu0 %1499
    %1501 = vrot.lane.b32.xlu0 %v1370, 32
    %v1502 = vpop.permute.xlu0 %1501
    %1503 = vrot.lane.b32.xlu0 %v1374, 32
    %v1504 = vpop.permute.xlu0 %1503
    %1505 = vrot.lane.b32.xlu0 %v1378, 32
    %v1506 = vpop.permute.xlu0 %1505
    %vm1507 = vcmp.lt.s32.totalorder %v298, 32
    %v1508 = vsel %vm1507, %v1492, %v1500
    %v1509 = vsel %vm1507, %v1494, %v1502
    %v1510 = vsel %vm1507, %v1496, %v1504
    %v1511 = vsel %vm1507, %v1498, %v1506
    %v1512 = vsel %vm1507, %v1484, %v1492
    %v1513 = vsel %vm1507, %v1486, %v1494
    %v1514 = vsel %vm1507, %v1488, %v1496
    %v1515 = vsel %vm1507, %v1490, %v1498
    %v1516 = vsel %vm1507, %v1476, %v1484
    %v1517 = vsel %vm1507, %v1478, %v1486
    %v1518 = vsel %vm1507, %v1480, %v1488
    %v1519 = vsel %vm1507, %v1482, %v1490
    %v1520 = vsel %vm1507, %v1500, %v1476
    %v1521 = vsel %vm1507, %v1502, %v1478
    %v1522 = vsel %vm1507, %v1504, %v1480
    %v1523 = vsel %vm1507, %v1506, %v1482
    %s1524 = scalar_lea.vmem %s1428, 1
    %v1525 = vld [vmem:[%s1524] ss:$8 sm:$0xf]
    %v1527 = vlaneseq
    %v1528 = vshrl.u32 %v1527, 7
    %v1529 = vsub.s32 0, %v1528
    %v1530 = vrot.slane %v1525, %v1529
    %v1531 = vlaneseq
    %v1532 = vshrl.u32 %v1531, 7
    %v1533 = vsub.s32 1, %v1532
    %v1534 = vrot.slane %v1525, %v1533
    %v1535 = vlaneseq
    %v1536 = vshrl.u32 %v1535, 7
    %v1537 = vsub.s32 2, %v1536
    %v1538 = vrot.slane %v1525, %v1537
    %v1539 = vlaneseq
    %v1540 = vshrl.u32 %v1539, 7
    %v1541 = vsub.s32 3, %v1540
    %v1542 = vrot.slane %v1525, %v1541
    %v1547 = vmul.f32 %v1520, %v1530
    %v1548 = vmul.f32 %v1516, %v1534
    %v1549 = vmul.f32 %v1512, %v1538
    %v1550 = vmul.f32 %v1508, %v1542
    %v1551 = vmul.f32 %v1521, %v1530
    %v1552 = vmul.f32 %v1517, %v1534
    %v1553 = vmul.f32 %v1513, %v1538
    %v1554 = vmul.f32 %v1509, %v1542
    %v1555 = vmul.f32 %v1522, %v1530
    %v1556 = vmul.f32 %v1518, %v1534
    %v1557 = vmul.f32 %v1514, %v1538
    %v1558 = vmul.f32 %v1510, %v1542
    %v1559 = vmul.f32 %v1523, %v1530
    %v1560 = vmul.f32 %v1519, %v1534
    %v1561 = vmul.f32 %v1515, %v1538
    %v1562 = vmul.f32 %v1511, %v1542
    %v1563 = vpack.c.bf16 %v1551, %v1547
    %v1564 = vpack.c.bf16 %v1552, %v1548
    %v1565 = vpack.c.bf16 %v1553, %v1549
    %v1566 = vpack.c.bf16 %v1554, %v1550
    %v1567 = vpack.c.bf16 %v1559, %v1555
    %v1568 = vpack.c.bf16 %v1560, %v1556
    %v1569 = vpack.c.bf16 %v1561, %v1557
    %v1570 = vpack.c.bf16 %v1562, %v1558
    %1571 = vrot.lane.b32.xlu0 %v1363, 30
    %v1572 = vpop.permute.xlu0 %1571
    %1573 = vrot.lane.b32.xlu0 %v1367, 30
    %v1574 = vpop.permute.xlu0 %1573
    %1575 = vrot.lane.b32.xlu0 %v1371, 30
    %v1576 = vpop.permute.xlu0 %1575
    %1577 = vrot.lane.b32.xlu0 %v1375, 30
    %v1578 = vpop.permute.xlu0 %1577
    %1579 = vrot.lane.b32.xlu0 %v1364, 30
    %v1580 = vpop.permute.xlu0 %1579
    %1581 = vrot.lane.b32.xlu0 %v1368, 30
    %v1582 = vpop.permute.xlu0 %1581
    %1583 = vrot.lane.b32.xlu0 %v1372, 30
    %v1584 = vpop.permute.xlu0 %1583
    %1585 = vrot.lane.b32.xlu0 %v1376, 30
    %v1586 = vpop.permute.xlu0 %1585
    %1587 = vrot.lane.b32.xlu0 %v1365, 30
    %v1588 = vpop.permute.xlu0 %1587
    %1589 = vrot.lane.b32.xlu0 %v1369, 30
    %v1590 = vpop.permute.xlu0 %1589
    %1591 = vrot.lane.b32.xlu0 %v1373, 30
    %v1592 = vpop.permute.xlu0 %1591
    %1593 = vrot.lane.b32.xlu0 %v1377, 30
    %v1594 = vpop.permute.xlu0 %1593
    %1595 = vrot.lane.b32.xlu0 %v1366, 30
    %v1596 = vpop.permute.xlu0 %1595
    %1597 = vrot.lane.b32.xlu0 %v1370, 30
    %v1598 = vpop.permute.xlu0 %1597
    %1599 = vrot.lane.b32.xlu0 %v1374, 30
    %v1600 = vpop.permute.xlu0 %1599
    %1601 = vrot.lane.b32.xlu0 %v1378, 30
    %v1602 = vpop.permute.xlu0 %1601
    %vm1603 = vcmp.lt.s32.totalorder %v298, 30
    %v1604 = vsel %vm1603, %v1588, %v1596
    %v1605 = vsel %vm1603, %v1590, %v1598
    %v1606 = vsel %vm1603, %v1592, %v1600
    %v1607 = vsel %vm1603, %v1594, %v1602
    %v1608 = vsel %vm1603, %v1580, %v1588
    %v1609 = vsel %vm1603, %v1582, %v1590
    %v1610 = vsel %vm1603, %v1584, %v1592
    %v1611 = vsel %vm1603, %v1586, %v1594
    %v1612 = vsel %vm1603, %v1572, %v1580
    %v1613 = vsel %vm1603, %v1574, %v1582
    %v1614 = vsel %vm1603, %v1576, %v1584
    %v1615 = vsel %vm1603, %v1578, %v1586
    %v1616 = vsel %vm1603, %v1596, %v1572
    %v1617 = vsel %vm1603, %v1598, %v1574
    %v1618 = vsel %vm1603, %v1600, %v1576
    %v1619 = vsel %vm1603, %v1602, %v1578
    %s1620 = scalar_lea.vmem %s1428, 2
    %v1621 = vld [vmem:[%s1620] ss:$8 sm:$0xf]
    %v1623 = vlaneseq
    %v1624 = vshrl.u32 %v1623, 7
    %v1625 = vsub.s32 0, %v1624
    %v1626 = vrot.slane %v1621, %v1625
    %v1627 = vlaneseq
    %v1628 = vshrl.u32 %v1627, 7
    %v1629 = vsub.s32 1, %v1628
    %v1630 = vrot.slane %v1621, %v1629
    %v1631 = vlaneseq
    %v1632 = vshrl.u32 %v1631, 7
    %v1633 = vsub.s32 2, %v1632
    %v1634 = vrot.slane %v1621, %v1633
    %v1635 = vlaneseq
    %v1636 = vshrl.u32 %v1635, 7
    %v1637 = vsub.s32 3, %v1636
    %v1638 = vrot.slane %v1621, %v1637
    %v1643 = vmul.f32 %v1616, %v1626
    %v1644 = vmul.f32 %v1612, %v1630
    %v1645 = vmul.f32 %v1608, %v1634
    %v1646 = vmul.f32 %v1604, %v1638
    %v1647 = vmul.f32 %v1617, %v1626
    %v1648 = vmul.f32 %v1613, %v1630
    %v1649 = vmul.f32 %v1609, %v1634
    %v1650 = vmul.f32 %v1605, %v1638
    %v1651 = vmul.f32 %v1618, %v1626
    %v1652 = vmul.f32 %v1614, %v1630
    %v1653 = vmul.f32 %v1610, %v1634
    %v1654 = vmul.f32 %v1606, %v1638
    %v1655 = vmul.f32 %v1619, %v1626
    %v1656 = vmul.f32 %v1615, %v1630
    %v1657 = vmul.f32 %v1611, %v1634
    %v1658 = vmul.f32 %v1607, %v1638
    %v1659 = vpack.c.bf16 %v1647, %v1643
    %v1660 = vpack.c.bf16 %v1648, %v1644
    %v1661 = vpack.c.bf16 %v1649, %v1645
    %v1662 = vpack.c.bf16 %v1650, %v1646
    %v1663 = vpack.c.bf16 %v1655, %v1651
    %v1664 = vpack.c.bf16 %v1656, %v1652
    %v1665 = vpack.c.bf16 %v1657, %v1653
    %v1666 = vpack.c.bf16 %v1658, %v1654
    %1667 = vrot.lane.b32.xlu0 %v1363, 2
    %v1668 = vpop.permute.xlu0 %1667
    %1669 = vrot.lane.b32.xlu0 %v1367, 2
    %v1670 = vpop.permute.xlu0 %1669
    %1671 = vrot.lane.b32.xlu0 %v1371, 2
    %v1672 = vpop.permute.xlu0 %1671
    %1673 = vrot.lane.b32.xlu0 %v1375, 2
    %v1674 = vpop.permute.xlu0 %1673
    %1675 = vrot.lane.b32.xlu0 %v1364, 2
    %v1676 = vpop.permute.xlu0 %1675
    %1677 = vrot.lane.b32.xlu0 %v1368, 2
    %v1678 = vpop.permute.xlu0 %1677
    %1679 = vrot.lane.b32.xlu0 %v1372, 2
    %v1680 = vpop.permute.xlu0 %1679
    %1681 = vrot.lane.b32.xlu0 %v1376, 2
    %v1682 = vpop.permute.xlu0 %1681
    %1683 = vrot.lane.b32.xlu0 %v1365, 2
    %v1684 = vpop.permute.xlu0 %1683
    %1685 = vrot.lane.b32.xlu0 %v1369, 2
    %v1686 = vpop.permute.xlu0 %1685
    %1687 = vrot.lane.b32.xlu0 %v1373, 2
    %v1688 = vpop.permute.xlu0 %1687
    %1689 = vrot.lane.b32.xlu0 %v1377, 2
    %v1690 = vpop.permute.xlu0 %1689
    %1691 = vrot.lane.b32.xlu0 %v1366, 2
    %v1692 = vpop.permute.xlu0 %1691
    %1693 = vrot.lane.b32.xlu0 %v1370, 2
    %v1694 = vpop.permute.xlu0 %1693
    %1695 = vrot.lane.b32.xlu0 %v1374, 2
    %v1696 = vpop.permute.xlu0 %1695
    %1697 = vrot.lane.b32.xlu0 %v1378, 2
    %v1698 = vpop.permute.xlu0 %1697
    %vm1699 = vcmp.lt.s32.totalorder %v298, 2
    %v1700 = vsel %vm1699, %v1684, %v1692
    %v1701 = vsel %vm1699, %v1686, %v1694
    %v1702 = vsel %vm1699, %v1688, %v1696
    %v1703 = vsel %vm1699, %v1690, %v1698
    %v1704 = vsel %vm1699, %v1676, %v1684
    %v1705 = vsel %vm1699, %v1678, %v1686
    %v1706 = vsel %vm1699, %v1680, %v1688
    %v1707 = vsel %vm1699, %v1682, %v1690
    %v1708 = vsel %vm1699, %v1668, %v1676
    %v1709 = vsel %vm1699, %v1670, %v1678
    %v1710 = vsel %vm1699, %v1672, %v1680
    %v1711 = vsel %vm1699, %v1674, %v1682
    %v1712 = vsel %vm1699, %v1692, %v1668
    %v1713 = vsel %vm1699, %v1694, %v1670
    %v1714 = vsel %vm1699, %v1696, %v1672
    %v1715 = vsel %vm1699, %v1698, %v1674
    %s1716 = scalar_lea.vmem %s1428, 3
    %v1717 = vld [vmem:[%s1716] ss:$8 sm:$0xf]
    %v1719 = vlaneseq
    %v1720 = vshrl.u32 %v1719, 7
    %v1721 = vsub.s32 0, %v1720
    %v1722 = vrot.slane %v1717, %v1721
    %v1723 = vlaneseq
    %v1724 = vshrl.u32 %v1723, 7
    %v1725 = vsub.s32 1, %v1724
    %v1726 = vrot.slane %v1717, %v1725
    %v1727 = vlaneseq
    %v1728 = vshrl.u32 %v1727, 7
    %v1729 = vsub.s32 2, %v1728
    %v1730 = vrot.slane %v1717, %v1729
    %v1731 = vlaneseq
    %v1732 = vshrl.u32 %v1731, 7
    %v1733 = vsub.s32 3, %v1732
    %v1734 = vrot.slane %v1717, %v1733
    %v1739 = vmul.f32 %v1712, %v1722
    %v1740 = vmul.f32 %v1708, %v1726
    %v1741 = vmul.f32 %v1704, %v1730
    %v1742 = vmul.f32 %v1700, %v1734
    %v1743 = vmul.f32 %v1713, %v1722
    %v1744 = vmul.f32 %v1709, %v1726
    %v1745 = vmul.f32 %v1705, %v1730
    %v1746 = vmul.f32 %v1701, %v1734
    %v1747 = vmul.f32 %v1714, %v1722
    %v1748 = vmul.f32 %v1710, %v1726
    %v1749 = vmul.f32 %v1706, %v1730
    %v1750 = vmul.f32 %v1702, %v1734
    %v1751 = vmul.f32 %v1715, %v1722
    %v1752 = vmul.f32 %v1711, %v1726
    %v1753 = vmul.f32 %v1707, %v1730
    %v1754 = vmul.f32 %v1703, %v1734
    %v1755 = vpack.c.bf16 %v1743, %v1739
    %v1756 = vpack.c.bf16 %v1744, %v1740
    %v1757 = vpack.c.bf16 %v1745, %v1741
    %v1758 = vpack.c.bf16 %v1746, %v1742
    %v1759 = vpack.c.bf16 %v1751, %v1747
    %v1760 = vpack.c.bf16 %v1752, %v1748
    %v1761 = vpack.c.bf16 %v1753, %v1749
    %v1762 = vpack.c.bf16 %v1754, %v1750
    %s1763 = scalar_lea.vmem %s1428, 4
    %v1764 = vld [vmem:[%s1763] ss:$8 sm:$0xf]
    %v1766 = vlaneseq
    %v1767 = vshrl.u32 %v1766, 7
    %v1768 = vsub.s32 0, %v1767
    %v1769 = vrot.slane %v1764, %v1768
    %v1770 = vlaneseq
    %v1771 = vshrl.u32 %v1770, 7
    %v1772 = vsub.s32 1, %v1771
    %v1773 = vrot.slane %v1764, %v1772
    %v1774 = vlaneseq
    %v1775 = vshrl.u32 %v1774, 7
    %v1776 = vsub.s32 2, %v1775
    %v1777 = vrot.slane %v1764, %v1776
    %v1778 = vlaneseq
    %v1779 = vshrl.u32 %v1778, 7
    %v1780 = vsub.s32 3, %v1779
    %v1781 = vrot.slane %v1764, %v1780
    %v1786 = vmul.f32 %v1363, %v1769
    %v1787 = vmul.f32 %v1364, %v1773
    %v1788 = vmul.f32 %v1365, %v1777
    %v1789 = vmul.f32 %v1366, %v1781
    %v1790 = vmul.f32 %v1367, %v1769
    %v1791 = vmul.f32 %v1368, %v1773
    %v1792 = vmul.f32 %v1369, %v1777
    %v1793 = vmul.f32 %v1370, %v1781
    %v1794 = vmul.f32 %v1371, %v1769
    %v1795 = vmul.f32 %v1372, %v1773
    %v1796 = vmul.f32 %v1373, %v1777
    %v1797 = vmul.f32 %v1374, %v1781
    %v1798 = vmul.f32 %v1375, %v1769
    %v1799 = vmul.f32 %v1376, %v1773
    %v1800 = vmul.f32 %v1377, %v1777
    %v1801 = vmul.f32 %v1378, %v1781
    %v1802 = vpack.c.bf16 %v1790, %v1786
    %v1803 = vpack.c.bf16 %v1791, %v1787
    %v1804 = vpack.c.bf16 %v1792, %v1788
    %v1805 = vpack.c.bf16 %v1793, %v1789
    %v1806 = vpack.c.bf16 %v1798, %v1794
    %v1807 = vpack.c.bf16 %v1799, %v1795
    %v1808 = vpack.c.bf16 %v1800, %v1796
    %v1809 = vpack.c.bf16 %v1801, %v1797
    %1810 = vrot.lane.b32.xlu0 %v1363, 126
    %v1811 = vpop.permute.xlu0 %1810
    %1812 = vrot.lane.b32.xlu0 %v1367, 126
    %v1813 = vpop.permute.xlu0 %1812
    %1814 = vrot.lane.b32.xlu0 %v1371, 126
    %v1815 = vpop.permute.xlu0 %1814
    %1816 = vrot.lane.b32.xlu0 %v1375, 126
    %v1817 = vpop.permute.xlu0 %1816
    %1818 = vrot.lane.b32.xlu0 %v1364, 126
    %v1819 = vpop.permute.xlu0 %1818
    %1820 = vrot.lane.b32.xlu0 %v1368, 126
    %v1821 = vpop.permute.xlu0 %1820
    %1822 = vrot.lane.b32.xlu0 %v1372, 126
    %v1823 = vpop.permute.xlu0 %1822
    %1824 = vrot.lane.b32.xlu0 %v1376, 126
    %v1825 = vpop.permute.xlu0 %1824
    %1826 = vrot.lane.b32.xlu0 %v1365, 126
    %v1827 = vpop.permute.xlu0 %1826
    %1828 = vrot.lane.b32.xlu0 %v1369, 126
    %v1829 = vpop.permute.xlu0 %1828
    %1830 = vrot.lane.b32.xlu0 %v1373, 126
    %v1831 = vpop.permute.xlu0 %1830
    %1832 = vrot.lane.b32.xlu0 %v1377, 126
    %v1833 = vpop.permute.xlu0 %1832
    %1834 = vrot.lane.b32.xlu0 %v1366, 126
    %v1835 = vpop.permute.xlu0 %1834
    %1836 = vrot.lane.b32.xlu0 %v1370, 126
    %v1837 = vpop.permute.xlu0 %1836
    %1838 = vrot.lane.b32.xlu0 %v1374, 126
    %v1839 = vpop.permute.xlu0 %1838
    %1840 = vrot.lane.b32.xlu0 %v1378, 126
    %v1841 = vpop.permute.xlu0 %1840
    %vm1842 = vcmp.lt.s32.totalorder %v298, 126
    %v1843 = vsel %vm1842, %v1827, %v1835
    %v1844 = vsel %vm1842, %v1829, %v1837
    %v1845 = vsel %vm1842, %v1831, %v1839
    %v1846 = vsel %vm1842, %v1833, %v1841
    %v1847 = vsel %vm1842, %v1819, %v1827
    %v1848 = vsel %vm1842, %v1821, %v1829
    %v1849 = vsel %vm1842, %v1823, %v1831
    %v1850 = vsel %vm1842, %v1825, %v1833
    %v1851 = vsel %vm1842, %v1811, %v1819
    %v1852 = vsel %vm1842, %v1813, %v1821
    %v1853 = vsel %vm1842, %v1815, %v1823
    %v1854 = vsel %vm1842, %v1817, %v1825
    %v1855 = vsel %vm1842, %v1835, %v1811
    %v1856 = vsel %vm1842, %v1837, %v1813
    %v1857 = vsel %vm1842, %v1839, %v1815
    %v1858 = vsel %vm1842, %v1841, %v1817
    %s1859 = scalar_lea.vmem %s1428, 5
    %v1860 = vld [vmem:[%s1859] ss:$8 sm:$0xf]
    %v1862 = vlaneseq
    %v1863 = vshrl.u32 %v1862, 7
    %v1864 = vsub.s32 0, %v1863
    %v1865 = vrot.slane %v1860, %v1864
    %v1866 = vlaneseq
    %v1867 = vshrl.u32 %v1866, 7
    %v1868 = vsub.s32 1, %v1867
    %v1869 = vrot.slane %v1860, %v1868
    %v1870 = vlaneseq
    %v1871 = vshrl.u32 %v1870, 7
    %v1872 = vsub.s32 2, %v1871
    %v1873 = vrot.slane %v1860, %v1872
    %v1874 = vlaneseq
    %v1875 = vshrl.u32 %v1874, 7
    %v1876 = vsub.s32 3, %v1875
    %v1877 = vrot.slane %v1860, %v1876
    %v1882 = vmul.f32 %v1851, %v1865
    %v1883 = vmul.f32 %v1847, %v1869
    %v1884 = vmul.f32 %v1843, %v1873
    %v1885 = vmul.f32 %v1855, %v1877
    %v1886 = vmul.f32 %v1852, %v1865
    %v1887 = vmul.f32 %v1848, %v1869
    %v1888 = vmul.f32 %v1844, %v1873
    %v1889 = vmul.f32 %v1856, %v1877
    %v1890 = vmul.f32 %v1853, %v1865
    %v1891 = vmul.f32 %v1849, %v1869
    %v1892 = vmul.f32 %v1845, %v1873
    %v1893 = vmul.f32 %v1857, %v1877
    %v1894 = vmul.f32 %v1854, %v1865
    %v1895 = vmul.f32 %v1850, %v1869
    %v1896 = vmul.f32 %v1846, %v1873
    %v1897 = vmul.f32 %v1858, %v1877
    %v1898 = vpack.c.bf16 %v1886, %v1882
    %v1899 = vpack.c.bf16 %v1887, %v1883
    %v1900 = vpack.c.bf16 %v1888, %v1884
    %v1901 = vpack.c.bf16 %v1889, %v1885
    %v1902 = vpack.c.bf16 %v1894, %v1890
    %v1903 = vpack.c.bf16 %v1895, %v1891
    %v1904 = vpack.c.bf16 %v1896, %v1892
    %v1905 = vpack.c.bf16 %v1897, %v1893
    %1906 = vrot.lane.b32.xlu0 %v1363, 98
    %v1907 = vpop.permute.xlu0 %1906
    %1908 = vrot.lane.b32.xlu0 %v1367, 98
    %v1909 = vpop.permute.xlu0 %1908
    %1910 = vrot.lane.b32.xlu0 %v1371, 98
    %v1911 = vpop.permute.xlu0 %1910
    %1912 = vrot.lane.b32.xlu0 %v1375, 98
    %v1913 = vpop.permute.xlu0 %1912
    %1914 = vrot.lane.b32.xlu0 %v1364, 98
    %v1915 = vpop.permute.xlu0 %1914
    %1916 = vrot.lane.b32.xlu0 %v1368, 98
    %v1917 = vpop.permute.xlu0 %1916
    %1918 = vrot.lane.b32.xlu0 %v1372, 98
    %v1919 = vpop.permute.xlu0 %1918
    %1920 = vrot.lane.b32.xlu0 %v1376, 98
    %v1921 = vpop.permute.xlu0 %1920
    %1922 = vrot.lane.b32.xlu0 %v1365, 98
    %v1923 = vpop.permute.xlu0 %1922
    %1924 = vrot.lane.b32.xlu0 %v1369, 98
    %v1925 = vpop.permute.xlu0 %1924
    %1926 = vrot.lane.b32.xlu0 %v1373, 98
    %v1927 = vpop.permute.xlu0 %1926
    %1928 = vrot.lane.b32.xlu0 %v1377, 98
    %v1929 = vpop.permute.xlu0 %1928
    %1930 = vrot.lane.b32.xlu0 %v1366, 98
    %v1931 = vpop.permute.xlu0 %1930
    %1932 = vrot.lane.b32.xlu0 %v1370, 98
    %v1933 = vpop.permute.xlu0 %1932
    %1934 = vrot.lane.b32.xlu0 %v1374, 98
    %v1935 = vpop.permute.xlu0 %1934
    %1936 = vrot.lane.b32.xlu0 %v1378, 98
    %v1937 = vpop.permute.xlu0 %1936
    %vm1938 = vcmp.lt.s32.totalorder %v298, 98
    %v1939 = vsel %vm1938, %v1923, %v1931
    %v1940 = vsel %vm1938, %v1925, %v1933
    %v1941 = vsel %vm1938, %v1927, %v1935
    %v1942 = vsel %vm1938, %v1929, %v1937
    %v1943 = vsel %vm1938, %v1915, %v1923
    %v1944 = vsel %vm1938, %v1917, %v1925
    %v1945 = vsel %vm1938, %v1919, %v1927
    %v1946 = vsel %vm1938, %v1921, %v1929
    %v1947 = vsel %vm1938, %v1907, %v1915
    %v1948 = vsel %vm1938, %v1909, %v1917
    %v1949 = vsel %vm1938, %v1911, %v1919
    %v1950 = vsel %vm1938, %v1913, %v1921
    %v1951 = vsel %vm1938, %v1931, %v1907
    %v1952 = vsel %vm1938, %v1933, %v1909
    %v1953 = vsel %vm1938, %v1935, %v1911
    %v1954 = vsel %vm1938, %v1937, %v1913
    %s1955 = scalar_lea.vmem %s1428, 6
    %v1956 = vld [vmem:[%s1955] ss:$8 sm:$0xf]
    %v1958 = vlaneseq
    %v1959 = vshrl.u32 %v1958, 7
    %v1960 = vsub.s32 0, %v1959
    %v1961 = vrot.slane %v1956, %v1960
    %v1962 = vlaneseq
    %v1963 = vshrl.u32 %v1962, 7
    %v1964 = vsub.s32 1, %v1963
    %v1965 = vrot.slane %v1956, %v1964
    %v1966 = vlaneseq
    %v1967 = vshrl.u32 %v1966, 7
    %v1968 = vsub.s32 2, %v1967
    %v1969 = vrot.slane %v1956, %v1968
    %v1970 = vlaneseq
    %v1971 = vshrl.u32 %v1970, 7
    %v1972 = vsub.s32 3, %v1971
    %v1973 = vrot.slane %v1956, %v1972
    %v1978 = vmul.f32 %v1947, %v1961
    %v1979 = vmul.f32 %v1943, %v1965
    %v1980 = vmul.f32 %v1939, %v1969
    %v1981 = vmul.f32 %v1951, %v1973
    %v1982 = vmul.f32 %v1948, %v1961
    %v1983 = vmul.f32 %v1944, %v1965
    %v1984 = vmul.f32 %v1940, %v1969
    %v1985 = vmul.f32 %v1952, %v1973
    %v1986 = vmul.f32 %v1949, %v1961
    %v1987 = vmul.f32 %v1945, %v1965
    %v1988 = vmul.f32 %v1941, %v1969
    %v1989 = vmul.f32 %v1953, %v1973
    %v1990 = vmul.f32 %v1950, %v1961
    %v1991 = vmul.f32 %v1946, %v1965
    %v1992 = vmul.f32 %v1942, %v1969
    %v1993 = vmul.f32 %v1954, %v1973
    %v1994 = vpack.c.bf16 %v1982, %v1978
    %v1995 = vpack.c.bf16 %v1983, %v1979
    %v1996 = vpack.c.bf16 %v1984, %v1980
    %v1997 = vpack.c.bf16 %v1985, %v1981
    %v1998 = vpack.c.bf16 %v1990, %v1986
    %v1999 = vpack.c.bf16 %v1991, %v1987
    %v2000 = vpack.c.bf16 %v1992, %v1988
    %v2001 = vpack.c.bf16 %v1993, %v1989
    %2002 = vrot.lane.b32.xlu0 %v1363, 96
    %v2003 = vpop.permute.xlu0 %2002
    %2004 = vrot.lane.b32.xlu0 %v1367, 96
    %v2005 = vpop.permute.xlu0 %2004
    %2006 = vrot.lane.b32.xlu0 %v1371, 96
    %v2007 = vpop.permute.xlu0 %2006
    %2008 = vrot.lane.b32.xlu0 %v1375, 96
    %v2009 = vpop.permute.xlu0 %2008
    %2010 = vrot.lane.b32.xlu0 %v1364, 96
    %v2011 = vpop.permute.xlu0 %2010
    %2012 = vrot.lane.b32.xlu0 %v1368, 96
    %v2013 = vpop.permute.xlu0 %2012
    %2014 = vrot.lane.b32.xlu0 %v1372, 96
    %v2015 = vpop.permute.xlu0 %2014
    %2016 = vrot.lane.b32.xlu0 %v1376, 96
    %v2017 = vpop.permute.xlu0 %2016
    %2018 = vrot.lane.b32.xlu0 %v1365, 96
    %v2019 = vpop.permute.xlu0 %2018
    %2020 = vrot.lane.b32.xlu0 %v1369, 96
    %v2021 = vpop.permute.xlu0 %2020
    %2022 = vrot.lane.b32.xlu0 %v1373, 96
    %v2023 = vpop.permute.xlu0 %2022
    %2024 = vrot.lane.b32.xlu0 %v1377, 96
    %v2025 = vpop.permute.xlu0 %2024
    %2026 = vrot.lane.b32.xlu0 %v1366, 96
    %v2027 = vpop.permute.xlu0 %2026
    %2028 = vrot.lane.b32.xlu0 %v1370, 96
    %v2029 = vpop.permute.xlu0 %2028
    %2030 = vrot.lane.b32.xlu0 %v1374, 96
    %v2031 = vpop.permute.xlu0 %2030
    %2032 = vrot.lane.b32.xlu0 %v1378, 96
    %v2033 = vpop.permute.xlu0 %2032
    %vm2034 = vcmp.lt.s32.totalorder %v298, 96
    %v2035 = vsel %vm2034, %v2019, %v2027
    %v2036 = vsel %vm2034, %v2021, %v2029
    %v2037 = vsel %vm2034, %v2023, %v2031
    %v2038 = vsel %vm2034, %v2025, %v2033
    %v2039 = vsel %vm2034, %v2011, %v2019
    %v2040 = vsel %vm2034, %v2013, %v2021
    %v2041 = vsel %vm2034, %v2015, %v2023
    %v2042 = vsel %vm2034, %v2017, %v2025
    %v2043 = vsel %vm2034, %v2003, %v2011
    %v2044 = vsel %vm2034, %v2005, %v2013
    %v2045 = vsel %vm2034, %v2007, %v2015
    %v2046 = vsel %vm2034, %v2009, %v2017
    %v2047 = vsel %vm2034, %v2027, %v2003
    %v2048 = vsel %vm2034, %v2029, %v2005
    %v2049 = vsel %vm2034, %v2031, %v2007
    %v2050 = vsel %vm2034, %v2033, %v2009
    %s2051 = scalar_lea.vmem %s1428, 7
    %v2052 = vld [vmem:[%s2051] ss:$8 sm:$0xf]
    %v2054 = vlaneseq
    %v2055 = vshrl.u32 %v2054, 7
    %v2056 = vsub.s32 0, %v2055
    %v2057 = vrot.slane %v2052, %v2056
    %v2058 = vlaneseq
    %v2059 = vshrl.u32 %v2058, 7
    %v2060 = vsub.s32 1, %v2059
    %v2061 = vrot.slane %v2052, %v2060
    %v2062 = vlaneseq
    %v2063 = vshrl.u32 %v2062, 7
    %v2064 = vsub.s32 2, %v2063
    %v2065 = vrot.slane %v2052, %v2064
    %v2066 = vlaneseq
    %v2067 = vshrl.u32 %v2066, 7
    %v2068 = vsub.s32 3, %v2067
    %v2069 = vrot.slane %v2052, %v2068
    %v2074 = vmul.f32 %v2043, %v2057
    %v2075 = vmul.f32 %v2039, %v2061
    %v2076 = vmul.f32 %v2035, %v2065
    %v2077 = vmul.f32 %v2047, %v2069
    %v2078 = vmul.f32 %v2044, %v2057
    %v2079 = vmul.f32 %v2040, %v2061
    %v2080 = vmul.f32 %v2036, %v2065
    %v2081 = vmul.f32 %v2048, %v2069
    %v2082 = vmul.f32 %v2045, %v2057
    %v2083 = vmul.f32 %v2041, %v2061
    %v2084 = vmul.f32 %v2037, %v2065
    %v2085 = vmul.f32 %v2049, %v2069
    %v2086 = vmul.f32 %v2046, %v2057
    %v2087 = vmul.f32 %v2042, %v2061
    %v2088 = vmul.f32 %v2038, %v2065
    %v2089 = vmul.f32 %v2050, %v2069
    %v2090 = vpack.c.bf16 %v2078, %v2074
    %v2091 = vpack.c.bf16 %v2079, %v2075
    %v2092 = vpack.c.bf16 %v2080, %v2076
    %v2093 = vpack.c.bf16 %v2081, %v2077
    %v2094 = vpack.c.bf16 %v2086, %v2082
    %v2095 = vpack.c.bf16 %v2087, %v2083
    %v2096 = vpack.c.bf16 %v2088, %v2084
    %v2097 = vpack.c.bf16 %v2089, %v2085
    %2098 = vrot.lane.b32.xlu0 %v1363, 94
    %v2099 = vpop.permute.xlu0 %2098
    %2100 = vrot.lane.b32.xlu0 %v1367, 94
    %v2101 = vpop.permute.xlu0 %2100
    %2102 = vrot.lane.b32.xlu0 %v1371, 94
    %v2103 = vpop.permute.xlu0 %2102
    %2104 = vrot.lane.b32.xlu0 %v1375, 94
    %v2105 = vpop.permute.xlu0 %2104
    %2106 = vrot.lane.b32.xlu0 %v1364, 94
    %v2107 = vpop.permute.xlu0 %2106
    %2108 = vrot.lane.b32.xlu0 %v1368, 94
    %v2109 = vpop.permute.xlu0 %2108
    %2110 = vrot.lane.b32.xlu0 %v1372, 94
    %v2111 = vpop.permute.xlu0 %2110
    %2112 = vrot.lane.b32.xlu0 %v1376, 94
    %v2113 = vpop.permute.xlu0 %2112
    %2114 = vrot.lane.b32.xlu0 %v1365, 94
    %v2115 = vpop.permute.xlu0 %2114
    %2116 = vrot.lane.b32.xlu0 %v1369, 94
    %v2117 = vpop.permute.xlu0 %2116
    %2118 = vrot.lane.b32.xlu0 %v1373, 94
    %v2119 = vpop.permute.xlu0 %2118
    %2120 = vrot.lane.b32.xlu0 %v1377, 94
    %v2121 = vpop.permute.xlu0 %2120
    %2122 = vrot.lane.b32.xlu0 %v1366, 94
    %v2123 = vpop.permute.xlu0 %2122
    %2124 = vrot.lane.b32.xlu0 %v1370, 94
    %v2125 = vpop.permute.xlu0 %2124
    %2126 = vrot.lane.b32.xlu0 %v1374, 94
    %v2127 = vpop.permute.xlu0 %2126
    %2128 = vrot.lane.b32.xlu0 %v1378, 94
    %v2129 = vpop.permute.xlu0 %2128
    %vm2130 = vcmp.lt.s32.totalorder %v298, 94
    %v2131 = vsel %vm2130, %v2115, %v2123
    %v2132 = vsel %vm2130, %v2117, %v2125
    %v2133 = vsel %vm2130, %v2119, %v2127
    %v2134 = vsel %vm2130, %v2121, %v2129
    %v2135 = vsel %vm2130, %v2107, %v2115
    %v2136 = vsel %vm2130, %v2109, %v2117
    %v2137 = vsel %vm2130, %v2111, %v2119
    %v2138 = vsel %vm2130, %v2113, %v2121
    %v2139 = vsel %vm2130, %v2099, %v2107
    %v2140 = vsel %vm2130, %v2101, %v2109
    %v2141 = vsel %vm2130, %v2103, %v2111
    %v2142 = vsel %vm2130, %v2105, %v2113
    %v2143 = vsel %vm2130, %v2123, %v2099
    %v2144 = vsel %vm2130, %v2125, %v2101
    %v2145 = vsel %vm2130, %v2127, %v2103
    %v2146 = vsel %vm2130, %v2129, %v2105
    %s2147 = scalar_lea.vmem %s1428, 32
    %v2148 = vld [vmem:[%s2147] ss:$8 sm:$0xf]
    %v2150 = vlaneseq
    %v2151 = vshrl.u32 %v2150, 7
    %v2152 = vsub.s32 0, %v2151
    %v2153 = vrot.slane %v2148, %v2152
    %v2154 = vlaneseq
    %v2155 = vshrl.u32 %v2154, 7
    %v2156 = vsub.s32 1, %v2155
    %v2157 = vrot.slane %v2148, %v2156
    %v2158 = vlaneseq
    %v2159 = vshrl.u32 %v2158, 7
    %v2160 = vsub.s32 2, %v2159
    %v2161 = vrot.slane %v2148, %v2160
    %v2162 = vlaneseq
    %v2163 = vshrl.u32 %v2162, 7
    %v2164 = vsub.s32 3, %v2163
    %v2165 = vrot.slane %v2148, %v2164
    %v2170 = vmul.f32 %v2139, %v2153
    %v2171 = vmul.f32 %v2135, %v2157
    %v2172 = vmul.f32 %v2131, %v2161
    %v2173 = vmul.f32 %v2143, %v2165
    %v2174 = vmul.f32 %v2140, %v2153
    %v2175 = vmul.f32 %v2136, %v2157
    %v2176 = vmul.f32 %v2132, %v2161
    %v2177 = vmul.f32 %v2144, %v2165
    %v2178 = vmul.f32 %v2141, %v2153
    %v2179 = vmul.f32 %v2137, %v2157
    %v2180 = vmul.f32 %v2133, %v2161
    %v2181 = vmul.f32 %v2145, %v2165
    %v2182 = vmul.f32 %v2142, %v2153
    %v2183 = vmul.f32 %v2138, %v2157
    %v2184 = vmul.f32 %v2134, %v2161
    %v2185 = vmul.f32 %v2146, %v2165
    %v2186 = vpack.c.bf16 %v2174, %v2170
    %v2187 = vpack.c.bf16 %v2175, %v2171
    %v2188 = vpack.c.bf16 %v2176, %v2172
    %v2189 = vpack.c.bf16 %v2177, %v2173
    %v2190 = vpack.c.bf16 %v2182, %v2178
    %v2191 = vpack.c.bf16 %v2183, %v2179
    %v2192 = vpack.c.bf16 %v2184, %v2180
    %v2193 = vpack.c.bf16 %v2185, %v2181
    %s2194 = scalar_lea.vmem %s2, 48
    %v2195 = vld [vmem:[%s2194] sm:$0xff]
    %v2196 = vld [vmem:[%s2194 + $0x8] sm:$0xf]
    %v2197 = vld [vmem:[%s2194 + $0xc] sm:$0xff]
    %v2198 = vld [vmem:[%s2194 + $0x14] sm:$0xf]
    %v2199 = vld [vmem:[%s2194 + $0x18] sm:$0xff]
    %v2200 = vld [vmem:[%s2194 + $0x20] sm:$0xf]
    %v2201 = vld [vmem:[%s2194 + $0x24] sm:$0xff]
    %v2202 = vld [vmem:[%s2194 + $0x2c] sm:$0xf]
    %s2203 = scalar_lea.vmem %s3, 64
    %v2204 = vld [vmem:[%s2203] sm:$0xff]
    %v2205 = vld [vmem:[%s2203 + $0x8] sm:$0xff]
    %v2206 = vld [vmem:[%s2203 + $0x10] sm:$0xff]
    %v2207 = vld [vmem:[%s2203 + $0x18] sm:$0xff]
    %2209 = vset.pattern.permute.xlu0 0
    %2210 = vperm.xlu0 %2209, %v2204
    %v2211 = vpop.permute.xlu0 %2210
    %2214 = vset.pattern.permute.xlu0 0
    %2215 = vperm.xlu0 %2214, %v2205
    %v2216 = vpop.permute.xlu0 %2215
    %2219 = vset.pattern.permute.xlu0 0
    %2220 = vperm.xlu0 %2219, %v2206
    %v2221 = vpop.permute.xlu0 %2220
    %2224 = vset.pattern.permute.xlu0 0
    %2225 = vperm.xlu0 %2224, %v2207
    %v2226 = vpop.permute.xlu0 %2225
    %v2236 = vunpack.c.l.b16 %v2195
    %v2237 = vunpack.c.h.b16 %v2195
    %v2238 = vunpack.c.l.b16 %v2196
    %v2239 = vunpack.c.l.b16 %v2197
    %v2240 = vunpack.c.h.b16 %v2197
    %v2241 = vunpack.c.l.b16 %v2198
    %v2242 = vunpack.c.l.b16 %v2199
    %v2243 = vunpack.c.h.b16 %v2199
    %v2244 = vunpack.c.l.b16 %v2200
    %v2245 = vunpack.c.l.b16 %v2201
    %v2246 = vunpack.c.h.b16 %v2201
    %v2247 = vunpack.c.l.b16 %v2202
    %v2248 = vpack.c.b16 %v2239, %v2236
    %v2249 = vpack.c.b16 %v2240, %v2237
    %v2250 = vpack.c.b16 %v2241, %v2238
    %v2251 = vpack.c.b16 %v2245, %v2242
    %v2252 = vpack.c.b16 %v2246, %v2243
    %v2253 = vpack.c.b16 %v2247, %v2244
    %v2259 = vsel %vm1144, %v2250, 0
    %v2262 = vsel %vm1144, %v2253, 0
    %2264 = vmatprep.subr.bf16.mxu0 %v1468
    %2265 = vmatpush1.bf16.msra.mxu0 %v1467
    %2266 = vmatprep.subr.bf16.mxu0 %v1472
    %2267 = vmatpush1.bf16.msra.mxu0 %v1471
    %2268 = vmatprep.subr.bf16.mxu0 %v1564
    %2269 = vmatpush1.bf16.msra.mxu0 %v1563
    %2270 = vmatprep.subr.bf16.mxu0 %v1568
    %2271 = vmatpush1.bf16.msra.mxu0 %v1567
    %2272 = vmatprep.subr.bf16.mxu0 %v1660
    %2273 = vmatpush1.bf16.msra.mxu0 %v1659
    %2274 = vmatprep.subr.bf16.mxu0 %v1664
    %2275 = vmatpush1.bf16.msra.mxu0 %v1663
    %2276 = vmatprep.subr.bf16.mxu0 %v1756
    %2277 = vmatpush1.bf16.msra.mxu0 %v1755
    %2278 = vmatprep.subr.bf16.mxu0 %v1760
    %2279 = vmatpush1.bf16.msra.mxu0 %v1759
    %2280 = vmatprep.subr.bf16.mxu0 %v1803
    %2281 = vmatpush1.bf16.msra.mxu0 %v1802
    %2282 = vmatprep.subr.bf16.mxu0 %v1807
    %2283 = vmatpush1.bf16.msra.mxu0 %v1806
    %2284 = vmatprep.subr.bf16.mxu0 %v1899
    %2285 = vmatpush1.bf16.msra.mxu0 %v1898
    %2286 = vmatprep.subr.bf16.mxu0 %v1903
    %2287 = vmatpush1.bf16.msra.mxu0 %v1902
    %2288 = vmatprep.subr.bf16.mxu0 %v1995
    %2289 = vmatpush1.bf16.msra.mxu0 %v1994
    %2290 = vmatprep.subr.bf16.mxu0 %v1999
    %2291 = vmatpush1.bf16.msra.mxu0 %v1998
    %2292 = vmatprep.subr.bf16.mxu0 %v2091
    %2293 = vmatpush1.bf16.msra.mxu0 %v2090
    %2294 = vmatprep.subr.bf16.mxu0 %v2095
    %2295 = vmatpush1.bf16.msra.mxu0 %v2094
    %2296 = vmatprep.mubr.bf16.mxu0 %v2249
    %2297 = vmatmul.mubr.bf16.gmra.mrb[0].mxu0 %v2248
    %v2298 = vpop.f32.mrb[0].mxu0
    %v2299 = vadd.f32 %v2211, %v2298
    %v2300 = vpop.f32.mrb[0].mxu0
    %v2301 = vadd.f32 %v2211, %v2300
    %v2302 = vpop.f32.mrb[0].mxu0
    %v2303 = vadd.f32 %v2216, %v2302
    %v2304 = vpop.f32.mrb[0].mxu0
    %v2305 = vadd.f32 %v2216, %v2304
    %2306 = vmatprep.mubr.bf16.mxu0 %v2252
    %2307 = vmatmul.mubr.bf16.gmra.mrb[0].mxu0 %v2251
    %v2308 = vpop.f32.mrb[0].mxu0
    %v2309 = vadd.f32 %v2221, %v2308
    %v2310 = vpop.f32.mrb[0].mxu0
    %v2311 = vadd.f32 %v2221, %v2310
    %v2312 = vpop.f32.mrb[0].mxu0
    %v2313 = vadd.f32 %v2226, %v2312
    %v2314 = vpop.f32.mrb[0].mxu0
    %v2315 = vadd.f32 %v2226, %v2314
    %2316 = vdwg.mxu0
    %2317 = vmatprep.subr.bf16.mxu0 %v2187
    %2318 = vmatpush1.bf16.msra.mxu0 %v2186
    %2319 = vmatprep.subr.bf16.mxu0 %v2191
    %2320 = vmatpush1.bf16.msra.mxu0 %v2190
    %2321 = vmatprep.subr.bf16.mxu0 0
    %2322 = vmatpush1.bf16.msra.mxu0 0
    %2323 = vmatprep.subr.bf16.mxu0 0
    %2324 = vmatpush1.bf16.msra.mxu0 0
    %2325 = vmatprep.subr.bf16.mxu0 0
    %2326 = vmatpush1.bf16.msra.mxu0 0
    %2327 = vmatprep.subr.bf16.mxu0 0
    %2328 = vmatpush1.bf16.msra.mxu0 0
    %2329 = vmatprep.subr.bf16.mxu0 0
    %2330 = vmatpush1.bf16.msra.mxu0 0
    %2331 = vmatprep.subr.bf16.mxu0 0
    %2332 = vmatpush1.bf16.msra.mxu0 0
    %2333 = vmatprep.subr.bf16.mxu0 0
    %2334 = vmatpush1.bf16.msra.mxu0 0
    %2335 = vmatprep.subr.bf16.mxu0 0
    %2336 = vmatpush1.bf16.msra.mxu0 0
    %2337 = vmatprep.subr.bf16.mxu0 0
    %2338 = vmatpush1.bf16.msra.mxu0 0
    %2339 = vmatprep.subr.bf16.mxu0 0
    %2340 = vmatpush1.bf16.msra.mxu0 0
    %2341 = vmatprep.subr.bf16.mxu0 0
    %2342 = vmatpush1.bf16.msra.mxu0 0
    %2343 = vmatprep.subr.bf16.mxu0 0
    %2344 = vmatpush1.bf16.msra.mxu0 0
    %2345 = vmatprep.subr.bf16.mxu0 0
    %2346 = vmatpush1.bf16.msra.mxu0 0
    %2347 = vmatprep.subr.bf16.mxu0 0
    %2348 = vmatpush1.bf16.msra.mxu0 0
    %2349 = vmatprep.mubr.bf16.mxu0 0
    %2350 = vmatmul.mubr.bf16.gmra.mrb[0].mxu0 %v2259
    %v2351 = vpop.f32.mrb[0].mxu0
    %v2352 = vadd.f32 %v2299, %v2351
    %v2353 = vpop.f32.mrb[0].mxu0
    %v2354 = vadd.f32 %v2301, %v2353
    %v2355 = vpop.f32.mrb[0].mxu0
    %v2356 = vadd.f32 %v2303, %v2355
    %v2357 = vpop.f32.mrb[0].mxu0
    %v2358 = vadd.f32 %v2305, %v2357
    %2359 = vmatprep.mubr.bf16.mxu0 0
    %2360 = vmatmul.mubr.bf16.gmra.mrb[0].mxu0 %v2262
    %v2361 = vpop.f32.mrb[0].mxu0
    %v2362 = vadd.f32 %v2309, %v2361
    %v2363 = vpop.f32.mrb[0].mxu0
    %v2364 = vadd.f32 %v2311, %v2363
    %v2365 = vpop.f32.mrb[0].mxu0
    %v2366 = vadd.f32 %v2313, %v2365
    %v2367 = vpop.f32.mrb[0].mxu0
    %v2368 = vadd.f32 %v2315, %v2367
    %2369 = vdwg.mxu0
    %2370 = vmatprep.subr.bf16.mxu0 %v1470
    %2371 = vmatpush1.bf16.msra.mxu0 %v1469
    %2372 = vmatprep.subr.bf16.mxu0 %v1474
    %2373 = vmatpush1.bf16.msra.mxu0 %v1473
    %2374 = vmatprep.subr.bf16.mxu0 %v1566
    %2375 = vmatpush1.bf16.msra.mxu0 %v1565
    %2376 = vmatprep.subr.bf16.mxu0 %v1570
    %2377 = vmatpush1.bf16.msra.mxu0 %v1569
    %2378 = vmatprep.subr.bf16.mxu0 %v1662
    %2379 = vmatpush1.bf16.msra.mxu0 %v1661
    %2380 = vmatprep.subr.bf16.mxu0 %v1666
    %2381 = vmatpush1.bf16.msra.mxu0 %v1665
    %2382 = vmatprep.subr.bf16.mxu0 %v1758
    %2383 = vmatpush1.bf16.msra.mxu0 %v1757
    %2384 = vmatprep.subr.bf16.mxu0 %v1762
    %2385 = vmatpush1.bf16.msra.mxu0 %v1761
    %2386 = vmatprep.subr.bf16.mxu0 %v1805
    %2387 = vmatpush1.bf16.msra.mxu0 %v1804
    %2388 = vmatprep.subr.bf16.mxu0 %v1809
    %2389 = vmatpush1.bf16.msra.mxu0 %v1808
    %2390 = vmatprep.subr.bf16.mxu0 %v1901
    %2391 = vmatpush1.bf16.msra.mxu0 %v1900
    %2392 = vmatprep.subr.bf16.mxu0 %v1905
    %2393 = vmatpush1.bf16.msra.mxu0 %v1904
    %2394 = vmatprep.subr.bf16.mxu0 %v1997
    %2395 = vmatpush1.bf16.msra.mxu0 %v1996
    %2396 = vmatprep.subr.bf16.mxu0 %v2001
    %2397 = vmatpush1.bf16.msra.mxu0 %v2000
    %2398 = vmatprep.subr.bf16.mxu0 %v2093
    %2399 = vmatpush1.bf16.msra.mxu0 %v2092
    %2400 = vmatprep.subr.bf16.mxu0 %v2097
    %2401 = vmatpush1.bf16.msra.mxu0 %v2096
    %2402 = vmatprep.mubr.bf16.mxu0 %v2249
    %2403 = vmatmul.mubr.bf16.gmra.mrb[0].mxu0 %v2248
    %v2404 = vpop.f32.mrb[0].mxu0
    %v2405 = vadd.f32 %v2211, %v2404
    %v2406 = vpop.f32.mrb[0].mxu0
    %v2407 = vadd.f32 %v2211, %v2406
    %v2408 = vpop.f32.mrb[0].mxu0
    %v2409 = vadd.f32 %v2216, %v2408
    %v2410 = vpop.f32.mrb[0].mxu0
    %v2411 = vadd.f32 %v2216, %v2410
    %2412 = vmatprep.mubr.bf16.mxu0 %v2252
    %2413 = vmatmul.mubr.bf16.gmra.mrb[0].mxu0 %v2251
    %v2414 = vpop.f32.mrb[0].mxu0
    %v2415 = vadd.f32 %v2221, %v2414
    %v2416 = vpop.f32.mrb[0].mxu0
    %v2417 = vadd.f32 %v2221, %v2416
    %v2418 = vpop.f32.mrb[0].mxu0
    %v2419 = vadd.f32 %v2226, %v2418
    %v2420 = vpop.f32.mrb[0].mxu0
    %v2421 = vadd.f32 %v2226, %v2420
    %2422 = vdwg.mxu0
    %2423 = vmatprep.subr.bf16.mxu0 %v2189
    %2424 = vmatpush1.bf16.msra.mxu0 %v2188
    %2425 = vmatprep.subr.bf16.mxu0 %v2193
    %2426 = vmatpush1.bf16.msra.mxu0 %v2192
    %2427 = vmatprep.subr.bf16.mxu0 0
    %2428 = vmatpush1.bf16.msra.mxu0 0
    %2429 = vmatprep.subr.bf16.mxu0 0
    %2430 = vmatpush1.bf16.msra.mxu0 0
    %2431 = vmatprep.subr.bf16.mxu0 0
    %2432 = vmatpush1.bf16.msra.mxu0 0
    %2433 = vmatprep.subr.bf16.mxu0 0
    %2434 = vmatpush1.bf16.msra.mxu0 0
    %2435 = vmatprep.subr.bf16.mxu0 0
    %2436 = vmatpush1.bf16.msra.mxu0 0
    %2437 = vmatprep.subr.bf16.mxu0 0
    %2438 = vmatpush1.bf16.msra.mxu0 0
    %2439 = vmatprep.subr.bf16.mxu0 0
    %2440 = vmatpush1.bf16.msra.mxu0 0
    %2441 = vmatprep.subr.bf16.mxu0 0
    %2442 = vmatpush1.bf16.msra.mxu0 0
    %2443 = vmatprep.subr.bf16.mxu0 0
    %2444 = vmatpush1.bf16.msra.mxu0 0
    %2445 = vmatprep.subr.bf16.mxu0 0
    %2446 = vmatpush1.bf16.msra.mxu0 0
    %2447 = vmatprep.subr.bf16.mxu0 0
    %2448 = vmatpush1.bf16.msra.mxu0 0
    %2449 = vmatprep.subr.bf16.mxu0 0
    %2450 = vmatpush1.bf16.msra.mxu0 0
    %2451 = vmatprep.subr.bf16.mxu0 0
    %2452 = vmatpush1.bf16.msra.mxu0 0
    %2453 = vmatprep.subr.bf16.mxu0 0
    %2454 = vmatpush1.bf16.msra.mxu0 0
    %2455 = vmatprep.mubr.bf16.mxu0 0
    %2456 = vmatmul.mubr.bf16.gmra.mrb[0].mxu0 %v2259
    %v2457 = vpop.f32.mrb[0].mxu0
    %v2458 = vadd.f32 %v2405, %v2457
    %v2459 = vpop.f32.mrb[0].mxu0
    %v2460 = vadd.f32 %v2407, %v2459
    %v2461 = vpop.f32.mrb[0].mxu0
    %v2462 = vadd.f32 %v2409, %v2461
    %v2463 = vpop.f32.mrb[0].mxu0
    %v2464 = vadd.f32 %v2411, %v2463
    %2465 = vmatprep.mubr.bf16.mxu0 0
    %2466 = vmatmul.mubr.bf16.gmra.mrb[0].mxu0 %v2262
    %v2467 = vpop.f32.mrb[0].mxu0
    %v2468 = vadd.f32 %v2415, %v2467
    %v2469 = vpop.f32.mrb[0].mxu0
    %v2470 = vadd.f32 %v2417, %v2469
    %v2471 = vpop.f32.mrb[0].mxu0
    %v2472 = vadd.f32 %v2419, %v2471
    %v2473 = vpop.f32.mrb[0].mxu0
    %v2474 = vadd.f32 %v2421, %v2473
    %2475 = vdwg.mxu0
    %v2476 = vmax.f32 %v2352, 0.0
    %v2477 = vmax.f32 %v2354, 0.0
    %v2478 = vmax.f32 %v2458, 0.0
    %v2479 = vmax.f32 %v2460, 0.0
    %v2480 = vmax.f32 %v2356, 0.0
    %v2481 = vmax.f32 %v2358, 0.0
    %v2482 = vmax.f32 %v2462, 0.0
    %v2483 = vmax.f32 %v2464, 0.0
    %v2484 = vmax.f32 %v2362, 0.0
    %v2485 = vmax.f32 %v2364, 0.0
    %v2486 = vmax.f32 %v2468, 0.0
    %v2487 = vmax.f32 %v2470, 0.0
    %v2488 = vmax.f32 %v2366, 0.0
    %v2489 = vmax.f32 %v2368, 0.0
    %v2490 = vmax.f32 %v2472, 0.0
    %v2491 = vmax.f32 %v2474, 0.0
    %v2492 = vadd.f32 %v249, %v2476
    %v2493 = vadd.f32 %v250, %v2477
    %v2494 = vadd.f32 %v251, %v2478
    %v2495 = vadd.f32 %v252, %v2479
    %v2496 = vadd.f32 %v253, %v2480
    %v2497 = vadd.f32 %v254, %v2481
    %v2498 = vadd.f32 %v255, %v2482
    %v2499 = vadd.f32 %v256, %v2483
    %v2500 = vadd.f32 %v257, %v2484
    %v2501 = vadd.f32 %v258, %v2485
    %v2502 = vadd.f32 %v259, %v2486
    %v2503 = vadd.f32 %v260, %v2487
    %v2504 = vadd.f32 %v261, %v2488
    %v2505 = vadd.f32 %v262, %v2489
    %v2506 = vadd.f32 %v263, %v2490
    %v2507 = vadd.f32 %v264, %v2491
    %2508 = vst [vmem:[#allocation2] sm:$0xff] %v2492
    %2509 = vst [vmem:[#allocation2 + $0x8] sm:$0xff] %v2493
    %2510 = vst [vmem:[#allocation2 + $0x10] sm:$0xff] %v2494
    %2511 = vst [vmem:[#allocation2 + $0x18] sm:$0xff] %v2495
    %2512 = vst [vmem:[#allocation2 + $0x20] sm:$0xff] %v2496
    %2513 = vst [vmem:[#allocation2 + $0x28] sm:$0xff] %v2497
    %2514 = vst [vmem:[#allocation2 + $0x30] sm:$0xff] %v2498
    %2515 = vst [vmem:[#allocation2 + $0x38] sm:$0xff] %v2499
    %2516 = vst [vmem:[#allocation2 + $0x40] sm:$0xff] %v2500
    %2517 = vst [vmem:[#allocation2 + $0x48] sm:$0xff] %v2501
    %2518 = vst [vmem:[#allocation2 + $0x50] sm:$0xff] %v2502
    %2519 = vst [vmem:[#allocation2 + $0x58] sm:$0xff] %v2503
    %2520 = vst [vmem:[#allocation2 + $0x60] sm:$0xff] %v2504
    %2521 = vst [vmem:[#allocation2 + $0x68] sm:$0xff] %v2505
    %2522 = vst [vmem:[#allocation2 + $0x70] sm:$0xff] %v2506
    %2523 = vst [vmem:[#allocation2 + $0x78] sm:$0xff] %v2507
    // Predicated region
    $region22: #{refinement_stage_block_cm.1} parent=1 // pred_check
      _
    $region23: #{refinement_stage_block_cm.1} parent=1 // pred_check_branch
      %2525 = sbr.rel (0) target = $region25
    $region24: #{refinement_stage_block_cm.1} parent=1 // pred_region
      %s2527 = ssub.s32 2048, 2048
      %2528 = vsyncadd [#allocation3], %s2527
      %s2529 = sshll.u32 [#allocation2], 4
      %s2530 = int_to_ptr.vmem [resolvable:$true] %s2529
      %2535 = dma.vmem_to_hbm [thread:$0]  %s2530, 2048, %s5, [#allocation3], 512, 512, 32
    $region25: #{refinement_stage_block_cm.1} parent=1 // pred_fallthru
      _
    // Predicated region
    $region26: #{refinement_stage_block_cm.1} parent=1 // pred_check
      _
    $region27: #{refinement_stage_block_cm.1} parent=1 // pred_check_branch
      %2537 = sbr.rel (0) target = $region29
    $region28: #{refinement_stage_block_cm.1} parent=1 // pred_region
      %2538 = dma.done [#allocation3], 2048
    $region29: #{refinement_stage_block_cm.1} parent=1 // pred_fallthru
      _
    %2539 = vsyncpa [#allocation3], 1

</llo_original>
